<compile_context>
chip_gen: v6e
topology: v6e:2x2x1
jax: 0.10.0
libtpu: 0.0.40
codegen_flags: <defaults>
</compile_context>

<pallas_src>
import math

import jax
import jax.numpy as jnp
from jax import lax
from jax.experimental import pallas as pl
from jax.experimental.pallas import tpu as pltpu


def _silu(z):
    # z * sigmoid(z), written via tanh so the transcendental rides the EUP slot
    # (avoids an exp + vector divide landing on the VALU path).
    return z * (0.5 * jnp.tanh(0.5 * z) + 0.5)


def point_encoder_kernel(x_ref, w1, b1, w2, b2, w3, b3, w4, b4, w5, b5, o_ref):
    h = x_ref[...].astype(jnp.float32)                      # (C_in, L)
    L = h.shape[1]

    # Sequence-edge masks implementing Conv1d zero padding=1.
    pos = lax.broadcasted_iota(jnp.int32, (1, L), 1)
    mask_prev = (pos != 0).astype(jnp.float32)
    mask_next = (pos != L - 1).astype(jnp.float32)

    def shifted(v):
        # v[:, l-1] and v[:, l+1] via XLU lane rotations + VPU edge masks.
        v_prev = pltpu.roll(v, shift=1, axis=1) * mask_prev
        v_next = pltpu.roll(v, shift=L - 1, axis=1) * mask_next
        return v_prev, v_next

    def conv3(v, w_ref, b_ref, act):
        # Conv1d(k=3, pad=1): three accumulating MXU dots (tap-major weight layout),
        # bias added afterwards as a (C_out, 1) broadcast on the VPU.
        v_prev, v_next = shifted(v)
        y = jnp.dot(w_ref[0], v_prev, preferred_element_type=jnp.float32)   # tap k=0 -> x[l-1]
        y = y + jnp.dot(w_ref[1], v, preferred_element_type=jnp.float32)    # tap k=1 -> x[l]
        y = y + jnp.dot(w_ref[2], v_next, preferred_element_type=jnp.float32)  # k=2 -> x[l+1]
        y = y + b_ref[...]
        return _silu(y) if act else y

    h = conv3(h, w1, b1, True)     # encoder_input: Conv(C_in -> H)   + SiLU
    h = conv3(h, w2, b2, True)     # middle[0]:     Conv(H -> H)      + SiLU
    h = conv3(h, w3, b3, True)     # middle[2]:     Conv(H -> H/2)    + SiLU
    h = conv3(h, w4, b4, True)     # output[0]:     Conv(H/2 -> 3)    + SiLU

    # output[2]: Conv(3 -> 1), no activation.  Nine scalar*vector VPU MACs; weights and
    # bias are SMEM scalars (no M=1 MXU dots, no padded tiny VMEM tiles).
    h_prev, h_next = shifted(h)                              # each (3, L)
    taps = (h_prev, h, h_next)
    y = jnp.zeros((1, L), jnp.float32) + b5[0]
    for c in range(3):
        for k in range(3):
            y = y + w5[3 * c + k] * taps[k][c:c + 1, :]
    o_ref[...] = y.astype(o_ref.dtype)
    # TODO(synk): residual=True branch (x + middle broadcast) not implemented; this kernel
    # covers the default residual=False forward path only.


def prepare_params(params):
    """One-time weight re-layout, hoisted out of the per-call path.

    params: list of 5 (weight (C_out, C_in, 3), bias (C_out,)) as in nn.Conv1d.
    Returns a flat tuple of arrays ready to feed point_encoder_forward."""
    prepped = []
    for (w, bvec) in params[:4]:
        prepped.append(jnp.transpose(w, (2, 0, 1)))   # (3, C_out, C_in): tap-major
        prepped.append(bvec[:, None])                  # (C_out, 1) column bias
    w5, b5 = params[4]
    prepped.append(w5[0].reshape(-1))                  # (9,): index = 3*c + k
    prepped.append(b5.reshape(-1))                     # (1,)
    return tuple(prepped)


def point_encoder_forward(x, prepped):
    """x: (B, C_in, L) float32.  prepped: output of prepare_params()."""
    B, C_in, L = x.shape

    # x in native layout; batch dim squeezed, grid over B (one sequence per step).
    in_specs = [pl.BlockSpec((None, C_in, L), lambda b: (b, 0, 0))]
    # Layers 1-4: full-array VMEM blocks (tap-major weight + column bias).
    for arr in prepped[:8]:
        in_specs.append(
            pl.BlockSpec(arr.shape, lambda b, _nd=arr.ndim: (0,) * _nd))
    # Last layer (3 -> 1): scalars in SMEM.
    in_specs += [pl.BlockSpec(memory_space=pltpu.MemorySpace.SMEM),
                 pl.BlockSpec(memory_space=pltpu.MemorySpace.SMEM)]

    return pl.pallas_call(
        point_encoder_kernel,
        out_shape=jax.ShapeDtypeStruct((B, 1, L), jnp.float32),
        grid=(B,),
        in_specs=in_specs,
        out_specs=pl.BlockSpec((None, 1, L), lambda b: (b, 0, 0)),
        compiler_params=pltpu.CompilerParams(
            # Single-TC chips (v5e/v6e): grid is a serial loop either way.  For large B
            # on v7x, switch to (pltpu.CORE_PARALLEL,) to actually shard across cores.
            dimension_semantics=("arbitrary",)),
    )(x, *prepped)


def init_params(key, input_channels, hidden_channels):
    """Deterministic Conv1d-style init (uniform +/- 1/sqrt(fan_in))."""
    layer_dims = [
        (input_channels, hidden_channels),        # encoder_input
        (hidden_channels, hidden_channels),       # middle[0]
        (hidden_channels, hidden_channels // 2),  # middle[2]
        (hidden_channels // 2, 3),                # output[0]
        (3, 1),                                   # output[2]
    ]
    params = []
    for (cin, cout) in layer_dims:
        key, kw, kb = jax.random.split(key, 3)
        bound = 1.0 / math.sqrt(cin * 3)
        w = jax.random.uniform(kw, (cout, cin, 3), jnp.float32, -bound, bound)
        b = jax.random.uniform(kb, (cout,), jnp.float32, -bound, bound)
        params.append((w, b))
    return params


# ----- pure-JAX reference (PyTorch Conv1d cross-correlation semantics) -----
def _ref_conv1d(x, w, b):
    B, C, L = x.shape
    xp = jnp.pad(x, ((0, 0), (0, 0), (1, 1)))
    y = sum(jnp.einsum('oc,bcl->bol', w[:, :, k], xp[:, :, k:k + L]) for k in range(3))
    return y + b[None, :, None]


def _ref_forward(x, params):
    h = x
    for i, (w, b) in enumerate(params):
        h = _ref_conv1d(h, w, b)
        if i < 4:  # last conv (output[2]) has no SiLU
            h = jax.nn.silu(h)
    return h


if __name__ == "__main__":
    B, C_IN, HIDDEN, L = 2, 16, 32, 128  # small shapes consistent with the module

    key = jax.random.PRNGKey(0)
    key, kx = jax.random.split(key)
    x = jax.random.normal(kx, (B, C_IN, L), dtype=jnp.float32)
    params = init_params(key, C_IN, HIDDEN)
    prepped = prepare_params(params)          # one-time weight re-layout (not per call)

    out = jax.block_until_ready(point_encoder_forward(x, prepped))
    ref = jax.block_until_ready(_ref_forward(x, params))

    assert out.shape == (B, 1, L), out.shape
    err = float(jnp.max(jnp.abs(out - ref)))
    assert jnp.allclose(out, ref, atol=1e-4, rtol=1e-4), err

    print("KERNEL_OK")
</pallas_src>

<mosaic_0001>
module attributes {stable_mosaic.version = 11 : i64} {
  func.func @point_encoder_kernel(%arg0: i32, %arg1: memref<1x16x128xf32, #tpu.memory_space<vmem>>, %arg2: memref<3x32x16xf32, #tpu.memory_space<vmem>>, %arg3: memref<32x1xf32, #tpu.memory_space<vmem>>, %arg4: memref<3x32x32xf32, #tpu.memory_space<vmem>>, %arg5: memref<32x1xf32, #tpu.memory_space<vmem>>, %arg6: memref<3x16x32xf32, #tpu.memory_space<vmem>>, %arg7: memref<16x1xf32, #tpu.memory_space<vmem>>, %arg8: memref<3x3x16xf32, #tpu.memory_space<vmem>>, %arg9: memref<3x1xf32, #tpu.memory_space<vmem>>, %arg10: memref<9xf32, #tpu.memory_space<smem>>, %arg11: memref<1xf32, #tpu.memory_space<smem>>, %arg12: memref<1x1x128xf32, #tpu.memory_space<vmem>>) attributes {dimension_semantics = [#tpu.dimension_semantics<arbitrary>], iteration_bounds = array<i64: 2>, scalar_prefetch = 0 : i64, scratch_operands = 0 : i64, tpu.core_type = #tpu.core_type<tc>, window_params = [{transform_indices = @transform_0, window_bounds = array<i64: 1, 16, 128>}, {pipeline_mode = #tpu.pipeline_mode<synchronous>, transform_indices = @transform_1, window_bounds = array<i64: 3, 32, 16>}, {pipeline_mode = #tpu.pipeline_mode<synchronous>, transform_indices = @transform_2, window_bounds = array<i64: 32, 1>}, {pipeline_mode = #tpu.pipeline_mode<synchronous>, transform_indices = @transform_3, window_bounds = array<i64: 3, 32, 32>}, {pipeline_mode = #tpu.pipeline_mode<synchronous>, transform_indices = @transform_4, window_bounds = array<i64: 32, 1>}, {pipeline_mode = #tpu.pipeline_mode<synchronous>, transform_indices = @transform_5, window_bounds = array<i64: 3, 16, 32>}, {pipeline_mode = #tpu.pipeline_mode<synchronous>, transform_indices = @transform_6, window_bounds = array<i64: 16, 1>}, {pipeline_mode = #tpu.pipeline_mode<synchronous>, transform_indices = @transform_7, window_bounds = array<i64: 3, 3, 16>}, {pipeline_mode = #tpu.pipeline_mode<synchronous>, transform_indices = @transform_8, window_bounds = array<i64: 3, 1>}, {transform_indices = @transform_9, window_bounds = array<i64: 9>}, {transform_indices = @transform_10, window_bounds = array<i64: 1>}, {transform_indices = @transform_11, window_bounds = array<i64: 1, 1, 128>}]} {
    %c0 = arith.constant 0 : index
    %c0_0 = arith.constant 0 : index
    %c0_1 = arith.constant 0 : index
    %0 = vector.load %arg1[%c0, %c0_0, %c0_1] : memref<1x16x128xf32, #tpu.memory_space<vmem>>, vector<1x16x128xf32>
    %1 = vector.shape_cast %0 : vector<1x16x128xf32> to vector<16x128xf32>
    %2 = tpu.iota {dimensions = array<i32: 1>} : vector<1x128xi32>
    %c0_i32 = arith.constant 0 : i32
    %3 = vector.broadcast %c0_i32 : i32 to vector<1x128xi32>
    %4 = arith.cmpi ne, %2, %3 : vector<1x128xi32>
    %5 = arith.extui %4 : vector<1x128xi1> to vector<1x128xi32>
    %6 = arith.sitofp %5 : vector<1x128xi32> to vector<1x128xf32>
    %c127_i32 = arith.constant 127 : i32
    %7 = vector.broadcast %c127_i32 : i32 to vector<1x128xi32>
    %8 = arith.cmpi ne, %2, %7 : vector<1x128xi32>
    %9 = arith.extui %8 : vector<1x128xi1> to vector<1x128xi32>
    %10 = arith.sitofp %9 : vector<1x128xi32> to vector<1x128xf32>
    %c1_i32 = arith.constant 1 : i32
    %11 = tpu.dynamic_rotate %1 by %c1_i32 dim 1 : vector<16x128xf32>, i32 -> vector<16x128xf32>
    %12 = vector.broadcast %6 : vector<1x128xf32> to vector<16x128xf32>
    %13 = arith.mulf %11, %12 : vector<16x128xf32>
    %c127_i32_2 = arith.constant 127 : i32
    %14 = tpu.dynamic_rotate %1 by %c127_i32_2 dim 1 : vector<16x128xf32>, i32 -> vector<16x128xf32>
    %15 = vector.broadcast %10 : vector<1x128xf32> to vector<16x128xf32>
    %16 = arith.mulf %14, %15 : vector<16x128xf32>
    %c0_3 = arith.constant 0 : index
    %c0_4 = arith.constant 0 : index
    %c0_5 = arith.constant 0 : index
    %17 = vector.load %arg2[%c0_3, %c0_4, %c0_5] : memref<3x32x16xf32, #tpu.memory_space<vmem>>, vector<1x32x16xf32>
    %18 = vector.shape_cast %17 : vector<1x32x16xf32> to vector<32x16xf32>
    %cst = arith.constant dense<0.000000e+00> : vector<32x128xf32>
    %19 = tpu.matmul %18, %13, %cst {dimension_numbers = #tpu.dot_dimension_numbers<[1], [0], [0], [1], [0, 0, 1, 1], [], []>} : vector<32x16xf32>, vector<16x128xf32>, vector<32x128xf32> -> vector<32x128xf32>
    %c1 = arith.constant 1 : index
    %c0_6 = arith.constant 0 : index
    %c0_7 = arith.constant 0 : index
    %20 = vector.load %arg2[%c1, %c0_6, %c0_7] : memref<3x32x16xf32, #tpu.memory_space<vmem>>, vector<1x32x16xf32>
    %21 = vector.shape_cast %20 : vector<1x32x16xf32> to vector<32x16xf32>
    %cst_8 = arith.constant dense<0.000000e+00> : vector<32x128xf32>
    %22 = tpu.matmul %21, %1, %cst_8 {dimension_numbers = #tpu.dot_dimension_numbers<[1], [0], [0], [1], [0, 0, 1, 1], [], []>} : vector<32x16xf32>, vector<16x128xf32>, vector<32x128xf32> -> vector<32x128xf32>
    %23 = arith.addf %19, %22 : vector<32x128xf32>
    %c2 = arith.constant 2 : index
    %c0_9 = arith.constant 0 : index
    %c0_10 = arith.constant 0 : index
    %24 = vector.load %arg2[%c2, %c0_9, %c0_10] : memref<3x32x16xf32, #tpu.memory_space<vmem>>, vector<1x32x16xf32>
    %25 = vector.shape_cast %24 : vector<1x32x16xf32> to vector<32x16xf32>
    %cst_11 = arith.constant dense<0.000000e+00> : vector<32x128xf32>
    %26 = tpu.matmul %25, %16, %cst_11 {dimension_numbers = #tpu.dot_dimension_numbers<[1], [0], [0], [1], [0, 0, 1, 1], [], []>} : vector<32x16xf32>, vector<16x128xf32>, vector<32x128xf32> -> vector<32x128xf32>
    %27 = arith.addf %23, %26 : vector<32x128xf32>
    %c0_12 = arith.constant 0 : index
    %c0_13 = arith.constant 0 : index
    %28 = vector.load %arg3[%c0_12, %c0_13] : memref<32x1xf32, #tpu.memory_space<vmem>>, vector<32x1xf32>
    %29 = vector.broadcast %28 : vector<32x1xf32> to vector<32x128xf32>
    %30 = arith.addf %27, %29 : vector<32x128xf32>
    %cst_14 = arith.constant 5.000000e-01 : f32
    %31 = vector.broadcast %cst_14 : f32 to vector<32x128xf32>
    %32 = arith.mulf %31, %30 : vector<32x128xf32>
    %33 = math.tanh %32 : vector<32x128xf32>
    %cst_15 = arith.constant 5.000000e-01 : f32
    %34 = vector.broadcast %cst_15 : f32 to vector<32x128xf32>
    %35 = arith.mulf %34, %33 : vector<32x128xf32>
    %cst_16 = arith.constant 5.000000e-01 : f32
    %36 = vector.broadcast %cst_16 : f32 to vector<32x128xf32>
    %37 = arith.addf %35, %36 : vector<32x128xf32>
    %38 = arith.mulf %30, %37 : vector<32x128xf32>
    %c1_i32_17 = arith.constant 1 : i32
    %39 = tpu.dynamic_rotate %38 by %c1_i32_17 dim 1 : vector<32x128xf32>, i32 -> vector<32x128xf32>
    %40 = vector.broadcast %6 : vector<1x128xf32> to vector<32x128xf32>
    %41 = arith.mulf %39, %40 : vector<32x128xf32>
    %c127_i32_18 = arith.constant 127 : i32
    %42 = tpu.dynamic_rotate %38 by %c127_i32_18 dim 1 : vector<32x128xf32>, i32 -> vector<32x128xf32>
    %43 = vector.broadcast %10 : vector<1x128xf32> to vector<32x128xf32>
    %44 = arith.mulf %42, %43 : vector<32x128xf32>
    %c0_19 = arith.constant 0 : index
    %c0_20 = arith.constant 0 : index
    %c0_21 = arith.constant 0 : index
    %45 = vector.load %arg4[%c0_19, %c0_20, %c0_21] : memref<3x32x32xf32, #tpu.memory_space<vmem>>, vector<1x32x32xf32>
    %46 = vector.shape_cast %45 : vector<1x32x32xf32> to vector<32x32xf32>
    %cst_22 = arith.constant dense<0.000000e+00> : vector<32x128xf32>
    %47 = tpu.matmul %46, %41, %cst_22 {dimension_numbers = #tpu.dot_dimension_numbers<[1], [0], [0], [1], [0, 0, 1, 1], [], []>} : vector<32x32xf32>, vector<32x128xf32>, vector<32x128xf32> -> vector<32x128xf32>
    %c1_23 = arith.constant 1 : index
    %c0_24 = arith.constant 0 : index
    %c0_25 = arith.constant 0 : index
    %48 = vector.load %arg4[%c1_23, %c0_24, %c0_25] : memref<3x32x32xf32, #tpu.memory_space<vmem>>, vector<1x32x32xf32>
    %49 = vector.shape_cast %48 : vector<1x32x32xf32> to vector<32x32xf32>
    %cst_26 = arith.constant dense<0.000000e+00> : vector<32x128xf32>
    %50 = tpu.matmul %49, %38, %cst_26 {dimension_numbers = #tpu.dot_dimension_numbers<[1], [0], [0], [1], [0, 0, 1, 1], [], []>} : vector<32x32xf32>, vector<32x128xf32>, vector<32x128xf32> -> vector<32x128xf32>
    %51 = arith.addf %47, %50 : vector<32x128xf32>
    %c2_27 = arith.constant 2 : index
    %c0_28 = arith.constant 0 : index
    %c0_29 = arith.constant 0 : index
    %52 = vector.load %arg4[%c2_27, %c0_28, %c0_29] : memref<3x32x32xf32, #tpu.memory_space<vmem>>, vector<1x32x32xf32>
    %53 = vector.shape_cast %52 : vector<1x32x32xf32> to vector<32x32xf32>
    %cst_30 = arith.constant dense<0.000000e+00> : vector<32x128xf32>
    %54 = tpu.matmul %53, %44, %cst_30 {dimension_numbers = #tpu.dot_dimension_numbers<[1], [0], [0], [1], [0, 0, 1, 1], [], []>} : vector<32x32xf32>, vector<32x128xf32>, vector<32x128xf32> -> vector<32x128xf32>
    %55 = arith.addf %51, %54 : vector<32x128xf32>
    %c0_31 = arith.constant 0 : index
    %c0_32 = arith.constant 0 : index
    %56 = vector.load %arg5[%c0_31, %c0_32] : memref<32x1xf32, #tpu.memory_space<vmem>>, vector<32x1xf32>
    %57 = vector.broadcast %56 : vector<32x1xf32> to vector<32x128xf32>
    %58 = arith.addf %55, %57 : vector<32x128xf32>
    %cst_33 = arith.constant 5.000000e-01 : f32
    %59 = vector.broadcast %cst_33 : f32 to vector<32x128xf32>
    %60 = arith.mulf %59, %58 : vector<32x128xf32>
    %61 = math.tanh %60 : vector<32x128xf32>
    %cst_34 = arith.constant 5.000000e-01 : f32
    %62 = vector.broadcast %cst_34 : f32 to vector<32x128xf32>
    %63 = arith.mulf %62, %61 : vector<32x128xf32>
    %cst_35 = arith.constant 5.000000e-01 : f32
    %64 = vector.broadcast %cst_35 : f32 to vector<32x128xf32>
    %65 = arith.addf %63, %64 : vector<32x128xf32>
    %66 = arith.mulf %58, %65 : vector<32x128xf32>
    %c1_i32_36 = arith.constant 1 : i32
    %67 = tpu.dynamic_rotate %66 by %c1_i32_36 dim 1 : vector<32x128xf32>, i32 -> vector<32x128xf32>
    %68 = vector.broadcast %6 : vector<1x128xf32> to vector<32x128xf32>
    %69 = arith.mulf %67, %68 : vector<32x128xf32>
    %c127_i32_37 = arith.constant 127 : i32
    %70 = tpu.dynamic_rotate %66 by %c127_i32_37 dim 1 : vector<32x128xf32>, i32 -> vector<32x128xf32>
    %71 = vector.broadcast %10 : vector<1x128xf32> to vector<32x128xf32>
    %72 = arith.mulf %70, %71 : vector<32x128xf32>
    %c0_38 = arith.constant 0 : index
    %c0_39 = arith.constant 0 : index
    %c0_40 = arith.constant 0 : index
    %73 = vector.load %arg6[%c0_38, %c0_39, %c0_40] : memref<3x16x32xf32, #tpu.memory_space<vmem>>, vector<1x16x32xf32>
    %74 = vector.shape_cast %73 : vector<1x16x32xf32> to vector<16x32xf32>
    %cst_41 = arith.constant dense<0.000000e+00> : vector<16x128xf32>
    %75 = tpu.matmul %74, %69, %cst_41 {dimension_numbers = #tpu.dot_dimension_numbers<[1], [0], [0], [1], [0, 0, 1, 1], [], []>} : vector<16x32xf32>, vector<32x128xf32>, vector<16x128xf32> -> vector<16x128xf32>
    %c1_42 = arith.constant 1 : index
    %c0_43 = arith.constant 0 : index
    %c0_44 = arith.constant 0 : index
    %76 = vector.load %arg6[%c1_42, %c0_43, %c0_44] : memref<3x16x32xf32, #tpu.memory_space<vmem>>, vector<1x16x32xf32>
    %77 = vector.shape_cast %76 : vector<1x16x32xf32> to vector<16x32xf32>
    %cst_45 = arith.constant dense<0.000000e+00> : vector<16x128xf32>
    %78 = tpu.matmul %77, %66, %cst_45 {dimension_numbers = #tpu.dot_dimension_numbers<[1], [0], [0], [1], [0, 0, 1, 1], [], []>} : vector<16x32xf32>, vector<32x128xf32>, vector<16x128xf32> -> vector<16x128xf32>
    %79 = arith.addf %75, %78 : vector<16x128xf32>
    %c2_46 = arith.constant 2 : index
    %c0_47 = arith.constant 0 : index
    %c0_48 = arith.constant 0 : index
    %80 = vector.load %arg6[%c2_46, %c0_47, %c0_48] : memref<3x16x32xf32, #tpu.memory_space<vmem>>, vector<1x16x32xf32>
    %81 = vector.shape_cast %80 : vector<1x16x32xf32> to vector<16x32xf32>
    %cst_49 = arith.constant dense<0.000000e+00> : vector<16x128xf32>
    %82 = tpu.matmul %81, %72, %cst_49 {dimension_numbers = #tpu.dot_dimension_numbers<[1], [0], [0], [1], [0, 0, 1, 1], [], []>} : vector<16x32xf32>, vector<32x128xf32>, vector<16x128xf32> -> vector<16x128xf32>
    %83 = arith.addf %79, %82 : vector<16x128xf32>
    %c0_50 = arith.constant 0 : index
    %c0_51 = arith.constant 0 : index
    %84 = vector.load %arg7[%c0_50, %c0_51] : memref<16x1xf32, #tpu.memory_space<vmem>>, vector<16x1xf32>
    %85 = vector.broadcast %84 : vector<16x1xf32> to vector<16x128xf32>
    %86 = arith.addf %83, %85 : vector<16x128xf32>
    %cst_52 = arith.constant 5.000000e-01 : f32
    %87 = vector.broadcast %cst_52 : f32 to vector<16x128xf32>
    %88 = arith.mulf %87, %86 : vector<16x128xf32>
    %89 = math.tanh %88 : vector<16x128xf32>
    %cst_53 = arith.constant 5.000000e-01 : f32
    %90 = vector.broadcast %cst_53 : f32 to vector<16x128xf32>
    %91 = arith.mulf %90, %89 : vector<16x128xf32>
    %cst_54 = arith.constant 5.000000e-01 : f32
    %92 = vector.broadcast %cst_54 : f32 to vector<16x128xf32>
    %93 = arith.addf %91, %92 : vector<16x128xf32>
    %94 = arith.mulf %86, %93 : vector<16x128xf32>
    %c1_i32_55 = arith.constant 1 : i32
    %95 = tpu.dynamic_rotate %94 by %c1_i32_55 dim 1 : vector<16x128xf32>, i32 -> vector<16x128xf32>
    %96 = vector.broadcast %6 : vector<1x128xf32> to vector<16x128xf32>
    %97 = arith.mulf %95, %96 : vector<16x128xf32>
    %c127_i32_56 = arith.constant 127 : i32
    %98 = tpu.dynamic_rotate %94 by %c127_i32_56 dim 1 : vector<16x128xf32>, i32 -> vector<16x128xf32>
    %99 = vector.broadcast %10 : vector<1x128xf32> to vector<16x128xf32>
    %100 = arith.mulf %98, %99 : vector<16x128xf32>
    %c0_57 = arith.constant 0 : index
    %c0_58 = arith.constant 0 : index
    %c0_59 = arith.constant 0 : index
    %101 = vector.load %arg8[%c0_57, %c0_58, %c0_59] : memref<3x3x16xf32, #tpu.memory_space<vmem>>, vector<1x3x16xf32>
    %102 = vector.shape_cast %101 : vector<1x3x16xf32> to vector<3x16xf32>
    %cst_60 = arith.constant dense<0.000000e+00> : vector<3x128xf32>
    %103 = tpu.matmul %102, %97, %cst_60 {dimension_numbers = #tpu.dot_dimension_numbers<[1], [0], [0], [1], [0, 0, 1, 1], [], []>} : vector<3x16xf32>, vector<16x128xf32>, vector<3x128xf32> -> vector<3x128xf32>
    %c1_61 = arith.constant 1 : index
    %c0_62 = arith.constant 0 : index
    %c0_63 = arith.constant 0 : index
    %104 = vector.load %arg8[%c1_61, %c0_62, %c0_63] : memref<3x3x16xf32, #tpu.memory_space<vmem>>, vector<1x3x16xf32>
    %105 = vector.shape_cast %104 : vector<1x3x16xf32> to vector<3x16xf32>
    %cst_64 = arith.constant dense<0.000000e+00> : vector<3x128xf32>
    %106 = tpu.matmul %105, %94, %cst_64 {dimension_numbers = #tpu.dot_dimension_numbers<[1], [0], [0], [1], [0, 0, 1, 1], [], []>} : vector<3x16xf32>, vector<16x128xf32>, vector<3x128xf32> -> vector<3x128xf32>
    %107 = arith.addf %103, %106 : vector<3x128xf32>
    %c2_65 = arith.constant 2 : index
    %c0_66 = arith.constant 0 : index
    %c0_67 = arith.constant 0 : index
    %108 = vector.load %arg8[%c2_65, %c0_66, %c0_67] : memref<3x3x16xf32, #tpu.memory_space<vmem>>, vector<1x3x16xf32>
    %109 = vector.shape_cast %108 : vector<1x3x16xf32> to vector<3x16xf32>
    %cst_68 = arith.constant dense<0.000000e+00> : vector<3x128xf32>
    %110 = tpu.matmul %109, %100, %cst_68 {dimension_numbers = #tpu.dot_dimension_numbers<[1], [0], [0], [1], [0, 0, 1, 1], [], []>} : vector<3x16xf32>, vector<16x128xf32>, vector<3x128xf32> -> vector<3x128xf32>
    %111 = arith.addf %107, %110 : vector<3x128xf32>
    %c0_69 = arith.constant 0 : index
    %c0_70 = arith.constant 0 : index
    %112 = vector.load %arg9[%c0_69, %c0_70] : memref<3x1xf32, #tpu.memory_space<vmem>>, vector<3x1xf32>
    %113 = vector.broadcast %112 : vector<3x1xf32> to vector<3x128xf32>
    %114 = arith.addf %111, %113 : vector<3x128xf32>
    %cst_71 = arith.constant 5.000000e-01 : f32
    %115 = vector.broadcast %cst_71 : f32 to vector<3x128xf32>
    %116 = arith.mulf %115, %114 : vector<3x128xf32>
    %117 = math.tanh %116 : vector<3x128xf32>
    %cst_72 = arith.constant 5.000000e-01 : f32
    %118 = vector.broadcast %cst_72 : f32 to vector<3x128xf32>
    %119 = arith.mulf %118, %117 : vector<3x128xf32>
    %cst_73 = arith.constant 5.000000e-01 : f32
    %120 = vector.broadcast %cst_73 : f32 to vector<3x128xf32>
    %121 = arith.addf %119, %120 : vector<3x128xf32>
    %122 = arith.mulf %114, %121 : vector<3x128xf32>
    %c1_i32_74 = arith.constant 1 : i32
    %123 = tpu.dynamic_rotate %122 by %c1_i32_74 dim 1 : vector<3x128xf32>, i32 -> vector<3x128xf32>
    %124 = vector.broadcast %6 : vector<1x128xf32> to vector<3x128xf32>
    %125 = arith.mulf %123, %124 : vector<3x128xf32>
    %c127_i32_75 = arith.constant 127 : i32
    %126 = tpu.dynamic_rotate %122 by %c127_i32_75 dim 1 : vector<3x128xf32>, i32 -> vector<3x128xf32>
    %127 = vector.broadcast %10 : vector<1x128xf32> to vector<3x128xf32>
    %128 = arith.mulf %126, %127 : vector<3x128xf32>
    %cst_76 = arith.constant 0.000000e+00 : f32
    %129 = vector.broadcast %cst_76 : f32 to vector<1x128xf32>
    %c0_77 = arith.constant 0 : index
    %130 = memref.load %arg11[%c0_77] : memref<1xf32, #tpu.memory_space<smem>>
    %131 = vector.broadcast %130 : f32 to vector<1x128xf32>
    %132 = arith.addf %129, %131 : vector<1x128xf32>
    %c0_78 = arith.constant 0 : index
    %133 = memref.load %arg10[%c0_78] : memref<9xf32, #tpu.memory_space<smem>>
    %134 = vector.extract_strided_slice %125 {offsets = [0, 0], sizes = [1, 128], strides = [1, 1]} : vector<3x128xf32> to vector<1x128xf32>
    %135 = vector.broadcast %133 : f32 to vector<1x128xf32>
    %136 = arith.mulf %135, %134 : vector<1x128xf32>
    %137 = arith.addf %132, %136 : vector<1x128xf32>
    %c1_79 = arith.constant 1 : index
    %138 = memref.load %arg10[%c1_79] : memref<9xf32, #tpu.memory_space<smem>>
    %139 = vector.extract_strided_slice %122 {offsets = [0, 0], sizes = [1, 128], strides = [1, 1]} : vector<3x128xf32> to vector<1x128xf32>
    %140 = vector.broadcast %138 : f32 to vector<1x128xf32>
    %141 = arith.mulf %140, %139 : vector<1x128xf32>
    %142 = arith.addf %137, %141 : vector<1x128xf32>
    %c2_80 = arith.constant 2 : index
    %143 = memref.load %arg10[%c2_80] : memref<9xf32, #tpu.memory_space<smem>>
    %144 = vector.extract_strided_slice %128 {offsets = [0, 0], sizes = [1, 128], strides = [1, 1]} : vector<3x128xf32> to vector<1x128xf32>
    %145 = vector.broadcast %143 : f32 to vector<1x128xf32>
    %146 = arith.mulf %145, %144 : vector<1x128xf32>
    %147 = arith.addf %142, %146 : vector<1x128xf32>
    %c3 = arith.constant 3 : index
    %148 = memref.load %arg10[%c3] : memref<9xf32, #tpu.memory_space<smem>>
    %149 = vector.extract_strided_slice %125 {offsets = [1, 0], sizes = [1, 128], strides = [1, 1]} : vector<3x128xf32> to vector<1x128xf32>
    %150 = vector.broadcast %148 : f32 to vector<1x128xf32>
    %151 = arith.mulf %150, %149 : vector<1x128xf32>
    %152 = arith.addf %147, %151 : vector<1x128xf32>
    %c4 = arith.constant 4 : index
    %153 = memref.load %arg10[%c4] : memref<9xf32, #tpu.memory_space<smem>>
    %154 = vector.extract_strided_slice %122 {offsets = [1, 0], sizes = [1, 128], strides = [1, 1]} : vector<3x128xf32> to vector<1x128xf32>
    %155 = vector.broadcast %153 : f32 to vector<1x128xf32>
    %156 = arith.mulf %155, %154 : vector<1x128xf32>
    %157 = arith.addf %152, %156 : vector<1x128xf32>
    %c5 = arith.constant 5 : index
    %158 = memref.load %arg10[%c5] : memref<9xf32, #tpu.memory_space<smem>>
    %159 = vector.extract_strided_slice %128 {offsets = [1, 0], sizes = [1, 128], strides = [1, 1]} : vector<3x128xf32> to vector<1x128xf32>
    %160 = vector.broadcast %158 : f32 to vector<1x128xf32>
    %161 = arith.mulf %160, %159 : vector<1x128xf32>
    %162 = arith.addf %157, %161 : vector<1x128xf32>
    %c6 = arith.constant 6 : index
    %163 = memref.load %arg10[%c6] : memref<9xf32, #tpu.memory_space<smem>>
    %164 = vector.extract_strided_slice %125 {offsets = [2, 0], sizes = [1, 128], strides = [1, 1]} : vector<3x128xf32> to vector<1x128xf32>
    %165 = vector.broadcast %163 : f32 to vector<1x128xf32>
    %166 = arith.mulf %165, %164 : vector<1x128xf32>
    %167 = arith.addf %162, %166 : vector<1x128xf32>
    %c7 = arith.constant 7 : index
    %168 = memref.load %arg10[%c7] : memref<9xf32, #tpu.memory_space<smem>>
    %169 = vector.extract_strided_slice %122 {offsets = [2, 0], sizes = [1, 128], strides = [1, 1]} : vector<3x128xf32> to vector<1x128xf32>
    %170 = vector.broadcast %168 : f32 to vector<1x128xf32>
    %171 = arith.mulf %170, %169 : vector<1x128xf32>
    %172 = arith.addf %167, %171 : vector<1x128xf32>
    %c8 = arith.constant 8 : index
    %173 = memref.load %arg10[%c8] : memref<9xf32, #tpu.memory_space<smem>>
    %174 = vector.extract_strided_slice %128 {offsets = [2, 0], sizes = [1, 128], strides = [1, 1]} : vector<3x128xf32> to vector<1x128xf32>
    %175 = vector.broadcast %173 : f32 to vector<1x128xf32>
    %176 = arith.mulf %175, %174 : vector<1x128xf32>
    %177 = arith.addf %172, %176 : vector<1x128xf32>
    %c0_81 = arith.constant 0 : index
    %c0_82 = arith.constant 0 : index
    %c0_83 = arith.constant 0 : index
    %178 = vector.load %arg12[%c0_81, %c0_82, %c0_83] : memref<1x1x128xf32, #tpu.memory_space<vmem>>, vector<1x1x128xf32>
    %179 = vector.shape_cast %178 : vector<1x1x128xf32> to vector<1x128xf32>
    %180 = vector.shape_cast %177 : vector<1x128xf32> to vector<1x1x128xf32>
    tpu.vector_store %arg12[%c0_81, %c0_82, %c0_83], %180 {strides = array<i32>} : memref<1x1x128xf32, #tpu.memory_space<vmem>>, vector<1x1x128xf32>,
    return
  }
  func.func @transform_0(%arg0: i32) -> (i32, i32, i32) {
    %c0_i32 = arith.constant 0 : i32
    %c0_i32_0 = arith.constant 0 : i32
    %c0_i32_1 = arith.constant 0 : i32
    return %arg0, %c0_i32, %c0_i32_0 : i32, i32, i32
  }
  func.func @transform_1(%arg0: i32) -> (i32, i32, i32) {
    %c0_i32 = arith.constant 0 : i32
    %c0_i32_0 = arith.constant 0 : i32
    %c0_i32_1 = arith.constant 0 : i32
    %c0_i32_2 = arith.constant 0 : i32
    return %c0_i32, %c0_i32_0, %c0_i32_1 : i32, i32, i32
  }
  func.func @transform_2(%arg0: i32) -> (i32, i32) {
    %c0_i32 = arith.constant 0 : i32
    %c0_i32_0 = arith.constant 0 : i32
    %c0_i32_1 = arith.constant 0 : i32
    return %c0_i32, %c0_i32_0 : i32, i32
  }
  func.func @transform_3(%arg0: i32) -> (i32, i32, i32) {
    %c0_i32 = arith.constant 0 : i32
    %c0_i32_0 = arith.constant 0 : i32
    %c0_i32_1 = arith.constant 0 : i32
    %c0_i32_2 = arith.constant 0 : i32
    return %c0_i32, %c0_i32_0, %c0_i32_1 : i32, i32, i32
  }
  func.func @transform_4(%arg0: i32) -> (i32, i32) {
    %c0_i32 = arith.constant 0 : i32
    %c0_i32_0 = arith.constant 0 : i32
    %c0_i32_1 = arith.constant 0 : i32
    return %c0_i32, %c0_i32_0 : i32, i32
  }
  func.func @transform_5(%arg0: i32) -> (i32, i32, i32) {
    %c0_i32 = arith.constant 0 : i32
    %c0_i32_0 = arith.constant 0 : i32
    %c0_i32_1 = arith.constant 0 : i32
    %c0_i32_2 = arith.constant 0 : i32
    return %c0_i32, %c0_i32_0, %c0_i32_1 : i32, i32, i32
  }
  func.func @transform_6(%arg0: i32) -> (i32, i32) {
    %c0_i32 = arith.constant 0 : i32
    %c0_i32_0 = arith.constant 0 : i32
    %c0_i32_1 = arith.constant 0 : i32
    return %c0_i32, %c0_i32_0 : i32, i32
  }
  func.func @transform_7(%arg0: i32) -> (i32, i32, i32) {
    %c0_i32 = arith.constant 0 : i32
    %c0_i32_0 = arith.constant 0 : i32
    %c0_i32_1 = arith.constant 0 : i32
    %c0_i32_2 = arith.constant 0 : i32
    return %c0_i32, %c0_i32_0, %c0_i32_1 : i32, i32, i32
  }
  func.func @transform_8(%arg0: i32) -> (i32, i32) {
    %c0_i32 = arith.constant 0 : i32
    %c0_i32_0 = arith.constant 0 : i32
    %c0_i32_1 = arith.constant 0 : i32
    return %c0_i32, %c0_i32_0 : i32, i32
  }
  func.func @transform_9(%arg0: i32) -> i32 {
    %c0_i32 = arith.constant 0 : i32
    %c0_i32_0 = arith.constant 0 : i32
    return %c0_i32 : i32
  }
  func.func @transform_10(%arg0: i32) -> i32 {
    %c0_i32 = arith.constant 0 : i32
    %c0_i32_0 = arith.constant 0 : i32
    return %c0_i32 : i32
  }
  func.func @transform_11(%arg0: i32) -> (i32, i32, i32) {
    %c0_i32 = arith.constant 0 : i32
    %c0_i32_0 = arith.constant 0 : i32
    %c0_i32_1 = arith.constant 0 : i32
    return %arg0, %c0_i32, %c0_i32_0 : i32, i32, i32
  }
}

</mosaic_0001>

<llo_original>
// kernel: tpu_custom_call.1
$region0: #{tpu_custom_call.1}
  #allocation0 [shape = 'u32[]', space=smem, size = 0x4, offset = 0x4, fixed_abs, tag = 'smem constant byte address 0x4 - core index']
  #allocation1 [shape = 'u32[144,128]{1,0:T(1,128)}', space=vmem, size = 0x12000, scoped, tag = 'internal scratch']
  #allocation2 [shape = 'f32[1]{0:T(128)S(6)}', space=smem, size = 0x200, scoped, tag = 'scoped memory for tpu_custom_call.1']
  %s0 = inlined_call_operand.vmem [shape: f32[2,16,128], index: 0, kind: input, shape index: {}]
  %s1 = inlined_call_operand.vmem [shape: f32[3,32,16], index: 1, kind: input, shape index: {}]
  %s2 = inlined_call_operand.vmem [shape: f32[32,1], index: 2, kind: input, shape index: {}]
  %s3 = inlined_call_operand.vmem [shape: f32[3,32,32], index: 3, kind: input, shape index: {}]
  %s4 = inlined_call_operand.vmem [shape: f32[32,1], index: 4, kind: input, shape index: {}]
  %s5 = inlined_call_operand.vmem [shape: f32[3,16,32], index: 5, kind: input, shape index: {}]
  %s6 = inlined_call_operand.vmem [shape: f32[16,1], index: 6, kind: input, shape index: {}]
  %s7 = inlined_call_operand.vmem [shape: f32[3,3,16], index: 7, kind: input, shape index: {}]
  %s8 = inlined_call_operand.vmem [shape: f32[3,1], index: 8, kind: input, shape index: {}]
  %s9 = inlined_call_operand.vmem [shape: f32[9], index: 9, kind: input, shape index: {}]
  %s10 = inlined_call_operand.<no memory space> [shape: f32[1], index: 10, kind: input, shape index: {}]
  %s11 = inlined_call_operand.hbm [shape: f32[2,1,128], index: 11, kind: output, shape index: {}]
  %s12 = sld [smem:[#allocation0]]
  $region81: #{tpu_custom_call.1} parent=0
    _
  %s14 = ssub.s32 1, %s12
  %s15 = scalar_select 0, %s14, %s12
  %16 = sst [smem:[#allocation2]] %s10
  $region1: #{tpu_custom_call.1} parent=0
    #allocation3 [shape = 'u8[512]{0}', space=smem, size = 0x200, scoped, tag = 'input window, operand 9, single buffered']
    #allocation4 [shape = 's32[2]{0}', space=sflag, size = 0x8, scoped, tag = 'scoped memory for tpu_custom_call.1']
    #allocation5 [shape = 's32[2]{0}', space=sflag, size = 0x8, scoped, tag = 'scoped memory for tpu_custom_call.1']
    #allocation6 [shape = 'u8[1024]{0}', space=vmem, size = 0x400, scoped, tag = 'output window, operand 0']
    %17 = vsyncpa [#allocation5], 0
    %18 = vsyncpa [#allocation4], 0
    %s19 = scalar_lea.sflag [#allocation4], 1
    %20 = vsyncpa %s19, 0
    loop: start=0, step=1, limit=4
    $region2: #{tpu_custom_call.1} parent=1 // loop_pre_header
      _
    $region3: #{tpu_custom_call.1} parent=1 // loop_header
      %s22 = sphi 0, %s26
      %p23 = scmp.ge.s32.totalorder %s22, 4
      %s32 = sphi 0, %s34
      %s35 = sphi 0, %s32
      %s36 = sphi 0, %s35
      %s52 = sphi 0, %s36
      %s56 = sphi 0, %s56
      %s58 = sphi 0, %s56
      %s59 = sphi 0, %s58
      %s73 = sphi 0, %s59
      %s77 = sphi 0, %s77
      %s79 = sphi 0, %s77
      %s80 = sphi 0, %s79
      %s94 = sphi 0, %s80
      %s98 = sphi 0, %s98
      %s100 = sphi 0, %s98
      %s101 = sphi 0, %s100
      %s115 = sphi 0, %s101
      %s119 = sphi 0, %s119
      %s121 = sphi 0, %s119
      %s122 = sphi 0, %s121
      %s136 = sphi 0, %s122
      %s140 = sphi 0, %s140
      %s142 = sphi 0, %s140
      %s143 = sphi 0, %s142
      %s157 = sphi 0, %s143
      %s161 = sphi 0, %s161
      %s163 = sphi 0, %s161
      %s164 = sphi 0, %s163
      %s178 = sphi 0, %s164
      %s182 = sphi 0, %s182
      %s184 = sphi 0, %s182
      %s185 = sphi 0, %s184
      %s199 = sphi 0, %s185
      %s203 = sphi 0, %s203
      %s205 = sphi 0, %s203
      %s206 = sphi 0, %s205
      %s220 = sphi 0, %s206
      %s224 = sphi 0, %s224
      %s226 = sphi 0, %s224
      %s227 = sphi 0, %s226
      %s241 = sphi 0, %s227
      %s245 = sphi 0, %s245
      %s247 = sphi 0, %s245
      %s248 = sphi 0, %s247
      %s262 = sphi 0, %s248
      %s268 = sphi 0, %s270
      %s271 = sphi 0, %s268
      %s272 = sphi 0, %s271
      %s288 = sphi 0, %s272
    $region4: #{tpu_custom_call.1} parent=1 // loop_header_branch
      %25 = sbr.rel (%p23) target = $region8
    $region5: #{tpu_custom_call.1} parent=1 // loop_body
      %s27 = ssub.s32 %s22, 1
      %s28 = ssub.s32 %s22, 2
      %s29 = sadd.s32 %s22, 1
      %s30 = ssub.s32 %s22, %s29
      %p31 = scmp.eq.s32.totalorder %s30, 0
      %s33 = sadd.s32 %s32, 1
      %s34 = scalar_select %p31, %s32, %s33
      %p37 = pneg %p31
      %p38 = scmp.eq.s32.totalorder %s22, 1
      %p39 = por %p37, %p38
      %p40 = scmp.ne.s32.totalorder %s32, %s35
      %p41 = scmp.eq.s32.totalorder %s22, 0
      %p42 = por %p40, %p41
      %p43 = scmp.ne.s32.totalorder %s32, %s35
      %p44 = scmp.eq.s32.totalorder %s27, 1
      %p45 = por %p43, %p44
      %p46 = scmp.ne.s32.totalorder %s35, %s36
      %p47 = scmp.eq.s32.totalorder %s27, 0
      %p48 = por %p46, %p47
      %p49 = scmp.ne.s32.totalorder %s35, %s36
      %p50 = scmp.eq.s32.totalorder %s28, 1
      %p51 = por %p49, %p50
      %p53 = scmp.ne.s32.totalorder %s36, %s52
      %p54 = scmp.eq.s32.totalorder %s28, 0
      %p55 = por %p53, %p54
      %s57 = sadd.s32 %s56, 1
      %p60 = scmp.eq.s32.totalorder %s22, 1
      %p61 = scmp.ne.s32.totalorder %s56, %s58
      %p62 = scmp.eq.s32.totalorder %s22, 0
      %p63 = por %p61, %p62
      %p64 = scmp.ne.s32.totalorder %s56, %s58
      %p65 = scmp.eq.s32.totalorder %s27, 1
      %p66 = por %p64, %p65
      %p67 = scmp.ne.s32.totalorder %s58, %s59
      %p68 = scmp.eq.s32.totalorder %s27, 0
      %p69 = por %p67, %p68
      %p70 = scmp.ne.s32.totalorder %s58, %s59
      %p71 = scmp.eq.s32.totalorder %s28, 1
      %p72 = por %p70, %p71
      %p74 = scmp.ne.s32.totalorder %s59, %s73
      %p75 = scmp.eq.s32.totalorder %s28, 0
      %p76 = por %p74, %p75
      %s78 = sadd.s32 %s77, 1
      %p81 = scmp.eq.s32.totalorder %s22, 1
      %p82 = scmp.ne.s32.totalorder %s77, %s79
      %p83 = scmp.eq.s32.totalorder %s22, 0
      %p84 = por %p82, %p83
      %p85 = scmp.ne.s32.totalorder %s77, %s79
      %p86 = scmp.eq.s32.totalorder %s27, 1
      %p87 = por %p85, %p86
      %p88 = scmp.ne.s32.totalorder %s79, %s80
      %p89 = scmp.eq.s32.totalorder %s27, 0
      %p90 = por %p88, %p89
      %p91 = scmp.ne.s32.totalorder %s79, %s80
      %p92 = scmp.eq.s32.totalorder %s28, 1
      %p93 = por %p91, %p92
      %p95 = scmp.ne.s32.totalorder %s80, %s94
      %p96 = scmp.eq.s32.totalorder %s28, 0
      %p97 = por %p95, %p96
      %s99 = sadd.s32 %s98, 1
      %p102 = scmp.eq.s32.totalorder %s22, 1
      %p103 = scmp.ne.s32.totalorder %s98, %s100
      %p104 = scmp.eq.s32.totalorder %s22, 0
      %p105 = por %p103, %p104
      %p106 = scmp.ne.s32.totalorder %s98, %s100
      %p107 = scmp.eq.s32.totalorder %s27, 1
      %p108 = por %p106, %p107
      %p109 = scmp.ne.s32.totalorder %s100, %s101
      %p110 = scmp.eq.s32.totalorder %s27, 0
      %p111 = por %p109, %p110
      %p112 = scmp.ne.s32.totalorder %s100, %s101
      %p113 = scmp.eq.s32.totalorder %s28, 1
      %p114 = por %p112, %p113
      %p116 = scmp.ne.s32.totalorder %s101, %s115
      %p117 = scmp.eq.s32.totalorder %s28, 0
      %p118 = por %p116, %p117
      %s120 = sadd.s32 %s119, 1
      %p123 = scmp.eq.s32.totalorder %s22, 1
      %p124 = scmp.ne.s32.totalorder %s119, %s121
      %p125 = scmp.eq.s32.totalorder %s22, 0
      %p126 = por %p124, %p125
      %p127 = scmp.ne.s32.totalorder %s119, %s121
      %p128 = scmp.eq.s32.totalorder %s27, 1
      %p129 = por %p127, %p128
      %p130 = scmp.ne.s32.totalorder %s121, %s122
      %p131 = scmp.eq.s32.totalorder %s27, 0
      %p132 = por %p130, %p131
      %p133 = scmp.ne.s32.totalorder %s121, %s122
      %p134 = scmp.eq.s32.totalorder %s28, 1
      %p135 = por %p133, %p134
      %p137 = scmp.ne.s32.totalorder %s122, %s136
      %p138 = scmp.eq.s32.totalorder %s28, 0
      %p139 = por %p137, %p138
      %s141 = sadd.s32 %s140, 1
      %p144 = scmp.eq.s32.totalorder %s22, 1
      %p145 = scmp.ne.s32.totalorder %s140, %s142
      %p146 = scmp.eq.s32.totalorder %s22, 0
      %p147 = por %p145, %p146
      %p148 = scmp.ne.s32.totalorder %s140, %s142
      %p149 = scmp.eq.s32.totalorder %s27, 1
      %p150 = por %p148, %p149
      %p151 = scmp.ne.s32.totalorder %s142, %s143
      %p152 = scmp.eq.s32.totalorder %s27, 0
      %p153 = por %p151, %p152
      %p154 = scmp.ne.s32.totalorder %s142, %s143
      %p155 = scmp.eq.s32.totalorder %s28, 1
      %p156 = por %p154, %p155
      %p158 = scmp.ne.s32.totalorder %s143, %s157
      %p159 = scmp.eq.s32.totalorder %s28, 0
      %p160 = por %p158, %p159
      %s162 = sadd.s32 %s161, 1
      %p165 = scmp.eq.s32.totalorder %s22, 1
      %p166 = scmp.ne.s32.totalorder %s161, %s163
      %p167 = scmp.eq.s32.totalorder %s22, 0
      %p168 = por %p166, %p167
      %p169 = scmp.ne.s32.totalorder %s161, %s163
      %p170 = scmp.eq.s32.totalorder %s27, 1
      %p171 = por %p169, %p170
      %p172 = scmp.ne.s32.totalorder %s163, %s164
      %p173 = scmp.eq.s32.totalorder %s27, 0
      %p174 = por %p172, %p173
      %p175 = scmp.ne.s32.totalorder %s163, %s164
      %p176 = scmp.eq.s32.totalorder %s28, 1
      %p177 = por %p175, %p176
      %p179 = scmp.ne.s32.totalorder %s164, %s178
      %p180 = scmp.eq.s32.totalorder %s28, 0
      %p181 = por %p179, %p180
      %s183 = sadd.s32 %s182, 1
      %p186 = scmp.eq.s32.totalorder %s22, 1
      %p187 = scmp.ne.s32.totalorder %s182, %s184
      %p188 = scmp.eq.s32.totalorder %s22, 0
      %p189 = por %p187, %p188
      %p190 = scmp.ne.s32.totalorder %s182, %s184
      %p191 = scmp.eq.s32.totalorder %s27, 1
      %p192 = por %p190, %p191
      %p193 = scmp.ne.s32.totalorder %s184, %s185
      %p194 = scmp.eq.s32.totalorder %s27, 0
      %p195 = por %p193, %p194
      %p196 = scmp.ne.s32.totalorder %s184, %s185
      %p197 = scmp.eq.s32.totalorder %s28, 1
      %p198 = por %p196, %p197
      %p200 = scmp.ne.s32.totalorder %s185, %s199
      %p201 = scmp.eq.s32.totalorder %s28, 0
      %p202 = por %p200, %p201
      %s204 = sadd.s32 %s203, 1
      %p207 = scmp.eq.s32.totalorder %s22, 1
      %p208 = scmp.ne.s32.totalorder %s203, %s205
      %p209 = scmp.eq.s32.totalorder %s22, 0
      %p210 = por %p208, %p209
      %p211 = scmp.ne.s32.totalorder %s203, %s205
      %p212 = scmp.eq.s32.totalorder %s27, 1
      %p213 = por %p211, %p212
      %p214 = scmp.ne.s32.totalorder %s205, %s206
      %p215 = scmp.eq.s32.totalorder %s27, 0
      %p216 = por %p214, %p215
      %p217 = scmp.ne.s32.totalorder %s205, %s206
      %p218 = scmp.eq.s32.totalorder %s28, 1
      %p219 = por %p217, %p218
      %p221 = scmp.ne.s32.totalorder %s206, %s220
      %p222 = scmp.eq.s32.totalorder %s28, 0
      %p223 = por %p221, %p222
      %s225 = sadd.s32 %s224, 1
      %p228 = scmp.eq.s32.totalorder %s22, 1
      %p229 = scmp.ne.s32.totalorder %s224, %s226
      %p230 = scmp.eq.s32.totalorder %s22, 0
      %p231 = por %p229, %p230
      %p232 = scmp.ne.s32.totalorder %s224, %s226
      %p233 = scmp.eq.s32.totalorder %s27, 1
      %p234 = por %p232, %p233
      %p235 = scmp.ne.s32.totalorder %s226, %s227
      %p236 = scmp.eq.s32.totalorder %s27, 0
      %p237 = por %p235, %p236
      %p238 = scmp.ne.s32.totalorder %s226, %s227
      %p239 = scmp.eq.s32.totalorder %s28, 1
      %p240 = por %p238, %p239
      %p242 = scmp.ne.s32.totalorder %s227, %s241
      %p243 = scmp.eq.s32.totalorder %s28, 0
      %p244 = por %p242, %p243
      %s246 = sadd.s32 %s245, 1
      %p249 = scmp.eq.s32.totalorder %s22, 1
      %p250 = scmp.ne.s32.totalorder %s245, %s247
      %p251 = scmp.eq.s32.totalorder %s22, 0
      %p252 = por %p250, %p251
      %p253 = scmp.ne.s32.totalorder %s245, %s247
      %p254 = scmp.eq.s32.totalorder %s27, 1
      %p255 = por %p253, %p254
      %p256 = scmp.ne.s32.totalorder %s247, %s248
      %p257 = scmp.eq.s32.totalorder %s27, 0
      %p258 = por %p256, %p257
      %p259 = scmp.ne.s32.totalorder %s247, %s248
      %p260 = scmp.eq.s32.totalorder %s28, 1
      %p261 = por %p259, %p260
      %p263 = scmp.ne.s32.totalorder %s248, %s262
      %p264 = scmp.eq.s32.totalorder %s28, 0
      %p265 = por %p263, %p264
      %s266 = ssub.s32 %s22, %s29
      %p267 = scmp.eq.s32.totalorder %s266, 0
      %s269 = sadd.s32 %s268, 1
      %s270 = scalar_select %p267, %s268, %s269
      %p273 = pneg %p267
      %p274 = scmp.eq.s32.totalorder %s22, 1
      %p275 = por %p273, %p274
      %p276 = scmp.ne.s32.totalorder %s268, %s271
      %p277 = scmp.eq.s32.totalorder %s22, 0
      %p278 = por %p276, %p277
      %p279 = scmp.ne.s32.totalorder %s268, %s271
      %p280 = scmp.eq.s32.totalorder %s27, 1
      %p281 = por %p279, %p280
      %p282 = scmp.ne.s32.totalorder %s271, %s272
      %p283 = scmp.eq.s32.totalorder %s27, 0
      %p284 = por %p282, %p283
      %p285 = scmp.ne.s32.totalorder %s271, %s272
      %p286 = scmp.eq.s32.totalorder %s28, 1
      %p287 = por %p285, %p286
      %p289 = scmp.ne.s32.totalorder %s272, %s288
      %p290 = scmp.eq.s32.totalorder %s28, 0
      %p291 = por %p289, %p290
      %p292 = scmp.le.s32.totalorder 1, %s22
      %p293 = scmp.lt.s32.totalorder %s22, 3
      %p294 = pnand %p292, %p293
      %p295 = pneg %p294
      // Predicated region
      $region9: #{tpu_custom_call.1} parent=5 // pred_check
        _
      $region10: #{tpu_custom_call.1} parent=5 // pred_check_branch
        %297 = sbr.rel (%p294) target = $region12
      $region11: #{tpu_custom_call.1} parent=5 // pred_region
        %s298 = ssub.s32 %s22, 1
        // Predicated region
        $region13: #{tpu_custom_call.1} parent=11 // pred_check
          %p299 = pneg %p69
        $region14: #{tpu_custom_call.1} parent=11 // pred_check_branch
          %301 = sbr.rel (%p299) target = $region16
        $region15: #{tpu_custom_call.1} parent=11 // pred_region
          _
        $region16: #{tpu_custom_call.1} parent=11 // pred_fallthru
          _
        // Predicated region
        $region17: #{tpu_custom_call.1} parent=11 // pred_check
          %p302 = pneg %p90
        $region18: #{tpu_custom_call.1} parent=11 // pred_check_branch
          %304 = sbr.rel (%p302) target = $region20
        $region19: #{tpu_custom_call.1} parent=11 // pred_region
          _
        $region20: #{tpu_custom_call.1} parent=11 // pred_fallthru
          _
        // Predicated region
        $region21: #{tpu_custom_call.1} parent=11 // pred_check
          %p305 = pneg %p111
        $region22: #{tpu_custom_call.1} parent=11 // pred_check_branch
          %307 = sbr.rel (%p305) target = $region24
        $region23: #{tpu_custom_call.1} parent=11 // pred_region
          _
        $region24: #{tpu_custom_call.1} parent=11 // pred_fallthru
          _
        // Predicated region
        $region25: #{tpu_custom_call.1} parent=11 // pred_check
          %p308 = pneg %p132
        $region26: #{tpu_custom_call.1} parent=11 // pred_check_branch
          %310 = sbr.rel (%p308) target = $region28
        $region27: #{tpu_custom_call.1} parent=11 // pred_region
          _
        $region28: #{tpu_custom_call.1} parent=11 // pred_fallthru
          _
        // Predicated region
        $region29: #{tpu_custom_call.1} parent=11 // pred_check
          %p311 = pneg %p153
        $region30: #{tpu_custom_call.1} parent=11 // pred_check_branch
          %313 = sbr.rel (%p311) target = $region32
        $region31: #{tpu_custom_call.1} parent=11 // pred_region
          _
        $region32: #{tpu_custom_call.1} parent=11 // pred_fallthru
          _
        // Predicated region
        $region33: #{tpu_custom_call.1} parent=11 // pred_check
          %p314 = pneg %p174
        $region34: #{tpu_custom_call.1} parent=11 // pred_check_branch
          %316 = sbr.rel (%p314) target = $region36
        $region35: #{tpu_custom_call.1} parent=11 // pred_region
          _
        $region36: #{tpu_custom_call.1} parent=11 // pred_fallthru
          _
        // Predicated region
        $region37: #{tpu_custom_call.1} parent=11 // pred_check
          %p317 = pneg %p195
        $region38: #{tpu_custom_call.1} parent=11 // pred_check_branch
          %319 = sbr.rel (%p317) target = $region40
        $region39: #{tpu_custom_call.1} parent=11 // pred_region
          _
        $region40: #{tpu_custom_call.1} parent=11 // pred_fallthru
          _
        // Predicated region
        $region41: #{tpu_custom_call.1} parent=11 // pred_check
          %p320 = pneg %p216
        $region42: #{tpu_custom_call.1} parent=11 // pred_check_branch
          %322 = sbr.rel (%p320) target = $region44
        $region43: #{tpu_custom_call.1} parent=11 // pred_region
          _
        $region44: #{tpu_custom_call.1} parent=11 // pred_fallthru
          _
        // Predicated region
        $region45: #{tpu_custom_call.1} parent=11 // pred_check
          %p323 = pneg %p237
        $region46: #{tpu_custom_call.1} parent=11 // pred_check_branch
          %325 = sbr.rel (%p323) target = $region48
        $region47: #{tpu_custom_call.1} parent=11 // pred_region
          %s327 = ssub.s32 16, 16
          %328 = vsyncadd [#allocation5], %s327
          %s330 = sshll.u32 %s9, 4
          %s331 = int_to_ptr.vmem [resolvable:$true] %s330
          %333 = dma.vmem_to_smem %s331, 16, [#allocation3], [#allocation5]
        $region48: #{tpu_custom_call.1} parent=11 // pred_fallthru
          _
        // Predicated region
        $region49: #{tpu_custom_call.1} parent=11 // pred_check
          %p334 = pneg %p258
        $region50: #{tpu_custom_call.1} parent=11 // pred_check_branch
          %336 = sbr.rel (%p334) target = $region52
        $region51: #{tpu_custom_call.1} parent=11 // pred_region
          _
        $region52: #{tpu_custom_call.1} parent=11 // pred_fallthru
          _
      $region12: #{tpu_custom_call.1} parent=5 // pred_fallthru
        _
      %p337 = scmp.lt.s32.totalorder %s22, 2
      // Predicated region
      $region53: #{tpu_custom_call.1} parent=5 // pred_check
        %p338 = pneg %p337
      $region54: #{tpu_custom_call.1} parent=5 // pred_check_branch
        %340 = sbr.rel (%p338) target = $region56
      $region55: #{tpu_custom_call.1} parent=5 // pred_region
        // Predicated region
        $region57: #{tpu_custom_call.1} parent=55 // pred_check
          %p341 = pneg %p42
        $region58: #{tpu_custom_call.1} parent=55 // pred_check_branch
          %343 = sbr.rel (%p341) target = $region60
        $region59: #{tpu_custom_call.1} parent=55 // pred_region
          %p344 = scmp.lt.s32.totalorder %s22, 1
          %s345 = scalar_select %p344, %s22, 1
          %s346 = smul.addr %s345, 2
          %s347 = smul.addr %s346, 8
          %s348 = scalar_lea.vmem %s0, %s347
        $region60: #{tpu_custom_call.1} parent=55 // pred_fallthru
          _
      $region56: #{tpu_custom_call.1} parent=5 // pred_fallthru
        _
      %p349 = scmp.le.s32.totalorder 1, %s22
      %p350 = scmp.lt.s32.totalorder %s22, 3
      %p351 = pnand %p349, %p350
      %p352 = pneg %p351
      // Predicated region
      $region61: #{tpu_custom_call.1} parent=5 // pred_check
        _
      $region62: #{tpu_custom_call.1} parent=5 // pred_check_branch
        %354 = sbr.rel (%p351) target = $region64
      $region63: #{tpu_custom_call.1} parent=5 // pred_region
        %s355 = ssub.s32 %s22, 1
        // Predicated region
        $region65: #{tpu_custom_call.1} parent=63 // pred_check
          %p356 = pneg %p237
        $region66: #{tpu_custom_call.1} parent=63 // pred_check_branch
          %358 = sbr.rel (%p356) target = $region68
        $region67: #{tpu_custom_call.1} parent=63 // pred_region
          %359 = dma.done [#allocation5], 16
        $region68: #{tpu_custom_call.1} parent=63 // pred_fallthru
          _
        %360 = sfence
        %p361 = scmp.lt.s32.totalorder %s27, 1
        %s362 = scalar_select %p361, %s27, 1
        %s363 = smul.addr %s362, 2
        %s364 = smul.addr %s363, 8
        %s365 = scalar_lea.vmem %s0, %s364
        %p366 = pneg %p48
        %p367 = pneg %p45
        %p368 = pneg %p69
        %p369 = pneg %p66
        %p370 = pneg %p90
        %p371 = pneg %p87
        %p372 = pneg %p111
        %p373 = pneg %p108
        %p374 = pneg %p132
        %p375 = pneg %p129
        %p376 = pneg %p153
        %p377 = pneg %p150
        %p378 = pneg %p174
        %p379 = pneg %p171
        %p380 = pneg %p195
        %p381 = pneg %p192
        %p382 = pneg %p216
        %p383 = pneg %p213
        %p384 = pneg %p237
        %p385 = pneg %p234
        %p386 = pneg %p258
        %p387 = pneg %p255
        %p388 = pneg %p284
        %p389 = pneg %p281
        %s390 = sand.u32 %s271, 1
        %s391 = scalar_lea.sflag [#allocation4], %s390
        %s392 = sand.u32 %s271, 1
        %s393 = scalar_lea.vmem [#allocation6], %s392
        %p394 = scmp.lt.s32.totalorder %s27, 1
        %s395 = scalar_select %p394, %s27, 1
        %s396 = smul.addr %s395, 2
        %s397 = smul.addr %s396, 8
        %s398 = scalar_lea.vmem %s0, %s397
        %v399 = vld [vmem:[%s398] sm:$0xff]
        %v400 = vld [vmem:[%s398 + $0x8] sm:$0xff]
        %v401 = vlaneseq
        %v402 = vand.u32 %v401, 127
        %vm403 = vcmp.ne.s32.totalorder %v402, 0
        %v404 = vsel %vm403, 1, 0
        %v405 = vcvt.s32.f32 %v404
        %vm406 = vcmp.ne.s32.totalorder %v402, 127
        %v407 = vsel %vm406, 1, 0
        %v408 = vcvt.s32.f32 %v407
        %409 = vrot.lane.b32.xlu0 %v399, 1
        %v410 = vpop.permute.xlu0 %409
        %411 = vrot.lane.b32.xlu0 %v400, 1
        %v412 = vpop.permute.xlu0 %411
        %v413 = vmul.f32 %v410, %v405
        %v414 = vmul.f32 %v412, %v405
        %415 = vrot.lane.b32.xlu0 %v399, 127
        %v416 = vpop.permute.xlu0 %415
        %417 = vrot.lane.b32.xlu0 %v400, 127
        %v418 = vpop.permute.xlu0 %417
        %v419 = vmul.f32 %v416, %v408
        %v420 = vmul.f32 %v418, %v408
        %v421 = vld [vmem:[%s1] sm:$0xff]
        %v422 = vld [vmem:[%s1 + $0x8] sm:$0xff]
        %v423 = vld [vmem:[%s1 + $0x10] sm:$0xff]
        %v424 = vld [vmem:[%s1 + $0x18] sm:$0xff]
        %s425 = scalar_lea.vmem %s1, 32
        %v426 = vld [vmem:[%s425] sm:$0xff]
        %v427 = vld [vmem:[%s425 + $0x8] sm:$0xff]
        %v428 = vld [vmem:[%s425 + $0x10] sm:$0xff]
        %v429 = vld [vmem:[%s425 + $0x18] sm:$0xff]
        %vm430 = vcmask 130048
        %v432 = vsel %vm430, %v426, 0
        %v435 = vsel %vm430, %v427, 0
        %v438 = vsel %vm430, %v428, 0
        %v441 = vsel %vm430, %v429, 0
        %443 = vmatprep.subr.mxu0 0.0
        %444 = vmatpush1.msra.mxu0 0.0
        %445 = vmatprep.subr.mxu0 0.0
        %446 = vmatpush1.msra.mxu0 0.0
        %447 = vmatprep.subr.mxu0 0.0
        %448 = vmatpush1.msra.mxu0 0.0
        %449 = vmatprep.subr.mxu0 0.0
        %450 = vmatpush1.msra.mxu0 0.0
        %451 = vmatprep.subr.mxu0 0.0
        %452 = vmatpush1.msra.mxu0 0.0
        %453 = vmatprep.subr.mxu0 0.0
        %454 = vmatpush1.msra.mxu0 0.0
        %455 = vmatprep.subr.mxu0 0.0
        %456 = vmatpush1.msra.mxu0 0.0
        %457 = vmatprep.subr.mxu0 0.0
        %458 = vmatpush1.msra.mxu0 0.0
        %459 = vmatprep.subr.mxu0 0.0
        %460 = vmatpush1.msra.mxu0 0.0
        %461 = vmatprep.subr.mxu0 0.0
        %462 = vmatpush1.msra.mxu0 0.0
        %463 = vmatprep.subr.mxu0 0.0
        %464 = vmatpush1.msra.mxu0 0.0
        %465 = vmatprep.subr.mxu0 0.0
        %466 = vmatpush1.msra.mxu0 0.0
        %467 = vmatprep.subr.mxu0 0.0
        %468 = vmatpush1.msra.mxu0 0.0
        %469 = vmatprep.subr.mxu0 0.0
        %470 = vmatpush1.msra.mxu0 0.0
        %471 = vmatprep.subr.mxu0 0.0
        %472 = vmatpush1.msra.mxu0 %v400
        %473 = vmatprep.subr.mxu0 0.0
        %474 = vmatpush1.msra.mxu0 %v399
        %475 = vmatprep.subr.mxu0 0.0
        %476 = vmatpush2.msra.mxu0 0.0
        %477 = vmatprep.subr.mxu0 0.0
        %478 = vmatpush2.msra.mxu0 0.0
        %479 = vmatprep.subr.mxu0 0.0
        %480 = vmatpush2.msra.mxu0 0.0
        %481 = vmatprep.subr.mxu0 0.0
        %482 = vmatpush2.msra.mxu0 0.0
        %483 = vmatprep.subr.mxu0 0.0
        %484 = vmatpush2.msra.mxu0 0.0
        %485 = vmatprep.subr.mxu0 0.0
        %486 = vmatpush2.msra.mxu0 0.0
        %487 = vmatprep.subr.mxu0 0.0
        %488 = vmatpush2.msra.mxu0 0.0
        %489 = vmatprep.subr.mxu0 0.0
        %490 = vmatpush2.msra.mxu0 0.0
        %491 = vmatprep.subr.mxu0 0.0
        %492 = vmatpush2.msra.mxu0 0.0
        %493 = vmatprep.subr.mxu0 0.0
        %494 = vmatpush2.msra.mxu0 0.0
        %495 = vmatprep.subr.mxu0 0.0
        %496 = vmatpush2.msra.mxu0 0.0
        %497 = vmatprep.subr.mxu0 0.0
        %498 = vmatpush2.msra.mxu0 0.0
        %499 = vmatprep.subr.mxu0 0.0
        %500 = vmatpush2.msra.mxu0 0.0
        %501 = vmatprep.subr.mxu0 0.0
        %502 = vmatpush2.msra.mxu0 0.0
        %503 = vmatprep.subr.mxu0 0.0
        %504 = vmatpush2.msra.mxu0 0.0
        %505 = vmatprep.subr.mxu0 0.0
        %506 = vmatpush2.msra.mxu0 0.0
        %507 = vmatprep.mubr.f32.mxu0 0.0
        %508 = vmatmul.mubr.f32.gmra.mxu0 %v432
        %v509 = vpop.f32.mrf.mxu0
        %v510 = vadd.f32 0.0, %v509
        %v511 = vpop.f32.mrf.mxu0
        %512 = vmatprep.mubr.f32.mxu0 0.0
        %513 = vmatmul.mubr.f32.gmra.mxu0 %v435
        %v514 = vpop.f32.mrf.mxu0
        %v515 = vadd.f32 0.0, %v514
        %v516 = vpop.f32.mrf.mxu0
        %517 = vmatprep.mubr.f32.mxu0 0.0
        %518 = vmatmul.mubr.f32.gmra.mxu0 %v438
        %v519 = vpop.f32.mrf.mxu0
        %v520 = vadd.f32 0.0, %v519
        %v521 = vpop.f32.mrf.mxu0
        %522 = vmatprep.mubr.f32.mxu0 0.0
        %523 = vmatmul.mubr.f32.gmra.mxu0 %v441
        %v524 = vpop.f32.mrf.mxu0
        %v525 = vadd.f32 0.0, %v524
        %v526 = vpop.f32.mrf.mxu0
        %527 = vdwg.mxu0
        %v529 = vsel %vm430, %v421, 0
        %v532 = vsel %vm430, %v422, 0
        %v535 = vsel %vm430, %v423, 0
        %v538 = vsel %vm430, %v424, 0
        %540 = vmatprep.subr.mxu0 0.0
        %541 = vmatpush1.msra.mxu0 0.0
        %542 = vmatprep.subr.mxu0 0.0
        %543 = vmatpush1.msra.mxu0 0.0
        %544 = vmatprep.subr.mxu0 0.0
        %545 = vmatpush1.msra.mxu0 0.0
        %546 = vmatprep.subr.mxu0 0.0
        %547 = vmatpush1.msra.mxu0 0.0
        %548 = vmatprep.subr.mxu0 0.0
        %549 = vmatpush1.msra.mxu0 0.0
        %550 = vmatprep.subr.mxu0 0.0
        %551 = vmatpush1.msra.mxu0 0.0
        %552 = vmatprep.subr.mxu0 0.0
        %553 = vmatpush1.msra.mxu0 0.0
        %554 = vmatprep.subr.mxu0 0.0
        %555 = vmatpush1.msra.mxu0 0.0
        %556 = vmatprep.subr.mxu0 0.0
        %557 = vmatpush1.msra.mxu0 0.0
        %558 = vmatprep.subr.mxu0 0.0
        %559 = vmatpush1.msra.mxu0 0.0
        %560 = vmatprep.subr.mxu0 0.0
        %561 = vmatpush1.msra.mxu0 0.0
        %562 = vmatprep.subr.mxu0 0.0
        %563 = vmatpush1.msra.mxu0 0.0
        %564 = vmatprep.subr.mxu0 0.0
        %565 = vmatpush1.msra.mxu0 0.0
        %566 = vmatprep.subr.mxu0 0.0
        %567 = vmatpush1.msra.mxu0 0.0
        %568 = vmatprep.subr.mxu0 0.0
        %569 = vmatpush1.msra.mxu0 %v414
        %570 = vmatprep.subr.mxu0 0.0
        %571 = vmatpush1.msra.mxu0 %v413
        %572 = vmatprep.subr.mxu0 0.0
        %573 = vmatpush2.msra.mxu0 0.0
        %574 = vmatprep.subr.mxu0 0.0
        %575 = vmatpush2.msra.mxu0 0.0
        %576 = vmatprep.subr.mxu0 0.0
        %577 = vmatpush2.msra.mxu0 0.0
        %578 = vmatprep.subr.mxu0 0.0
        %579 = vmatpush2.msra.mxu0 0.0
        %580 = vmatprep.subr.mxu0 0.0
        %581 = vmatpush2.msra.mxu0 0.0
        %582 = vmatprep.subr.mxu0 0.0
        %583 = vmatpush2.msra.mxu0 0.0
        %584 = vmatprep.subr.mxu0 0.0
        %585 = vmatpush2.msra.mxu0 0.0
        %586 = vmatprep.subr.mxu0 0.0
        %587 = vmatpush2.msra.mxu0 0.0
        %588 = vmatprep.subr.mxu0 0.0
        %589 = vmatpush2.msra.mxu0 0.0
        %590 = vmatprep.subr.mxu0 0.0
        %591 = vmatpush2.msra.mxu0 0.0
        %592 = vmatprep.subr.mxu0 0.0
        %593 = vmatpush2.msra.mxu0 0.0
        %594 = vmatprep.subr.mxu0 0.0
        %595 = vmatpush2.msra.mxu0 0.0
        %596 = vmatprep.subr.mxu0 0.0
        %597 = vmatpush2.msra.mxu0 0.0
        %598 = vmatprep.subr.mxu0 0.0
        %599 = vmatpush2.msra.mxu0 0.0
        %600 = vmatprep.subr.mxu0 0.0
        %601 = vmatpush2.msra.mxu0 0.0
        %602 = vmatprep.subr.mxu0 0.0
        %603 = vmatpush2.msra.mxu0 0.0
        %604 = vmatprep.mubr.f32.mxu0 0.0
        %605 = vmatmul.mubr.f32.gmra.mxu0 %v529
        %v606 = vpop.f32.mrf.mxu0
        %v607 = vadd.f32 %v510, %v606
        %v608 = vpop.f32.mrf.mxu0
        %609 = vmatprep.mubr.f32.mxu0 0.0
        %610 = vmatmul.mubr.f32.gmra.mxu0 %v532
        %v611 = vpop.f32.mrf.mxu0
        %v612 = vadd.f32 %v515, %v611
        %v613 = vpop.f32.mrf.mxu0
        %614 = vmatprep.mubr.f32.mxu0 0.0
        %615 = vmatmul.mubr.f32.gmra.mxu0 %v535
        %v616 = vpop.f32.mrf.mxu0
        %v617 = vadd.f32 %v520, %v616
        %v618 = vpop.f32.mrf.mxu0
        %619 = vmatprep.mubr.f32.mxu0 0.0
        %620 = vmatmul.mubr.f32.gmra.mxu0 %v538
        %v621 = vpop.f32.mrf.mxu0
        %v622 = vadd.f32 %v525, %v621
        %v623 = vpop.f32.mrf.mxu0
        %624 = vdwg.mxu0
        %s625 = scalar_lea.vmem %s1, 64
        %v626 = vld [vmem:[%s625] sm:$0xff]
        %v627 = vld [vmem:[%s625 + $0x8] sm:$0xff]
        %v628 = vld [vmem:[%s625 + $0x10] sm:$0xff]
        %v629 = vld [vmem:[%s625 + $0x18] sm:$0xff]
        %v631 = vsel %vm430, %v626, 0
        %v634 = vsel %vm430, %v627, 0
        %v637 = vsel %vm430, %v628, 0
        %v640 = vsel %vm430, %v629, 0
        %642 = vmatprep.subr.mxu0 0.0
        %643 = vmatpush1.msra.mxu0 0.0
        %644 = vmatprep.subr.mxu0 0.0
        %645 = vmatpush1.msra.mxu0 0.0
        %646 = vmatprep.subr.mxu0 0.0
        %647 = vmatpush1.msra.mxu0 0.0
        %648 = vmatprep.subr.mxu0 0.0
        %649 = vmatpush1.msra.mxu0 0.0
        %650 = vmatprep.subr.mxu0 0.0
        %651 = vmatpush1.msra.mxu0 0.0
        %652 = vmatprep.subr.mxu0 0.0
        %653 = vmatpush1.msra.mxu0 0.0
        %654 = vmatprep.subr.mxu0 0.0
        %655 = vmatpush1.msra.mxu0 0.0
        %656 = vmatprep.subr.mxu0 0.0
        %657 = vmatpush1.msra.mxu0 0.0
        %658 = vmatprep.subr.mxu0 0.0
        %659 = vmatpush1.msra.mxu0 0.0
        %660 = vmatprep.subr.mxu0 0.0
        %661 = vmatpush1.msra.mxu0 0.0
        %662 = vmatprep.subr.mxu0 0.0
        %663 = vmatpush1.msra.mxu0 0.0
        %664 = vmatprep.subr.mxu0 0.0
        %665 = vmatpush1.msra.mxu0 0.0
        %666 = vmatprep.subr.mxu0 0.0
        %667 = vmatpush1.msra.mxu0 0.0
        %668 = vmatprep.subr.mxu0 0.0
        %669 = vmatpush1.msra.mxu0 0.0
        %670 = vmatprep.subr.mxu0 0.0
        %671 = vmatpush1.msra.mxu0 %v420
        %672 = vmatprep.subr.mxu0 0.0
        %673 = vmatpush1.msra.mxu0 %v419
        %674 = vmatprep.subr.mxu0 0.0
        %675 = vmatpush2.msra.mxu0 0.0
        %676 = vmatprep.subr.mxu0 0.0
        %677 = vmatpush2.msra.mxu0 0.0
        %678 = vmatprep.subr.mxu0 0.0
        %679 = vmatpush2.msra.mxu0 0.0
        %680 = vmatprep.subr.mxu0 0.0
        %681 = vmatpush2.msra.mxu0 0.0
        %682 = vmatprep.subr.mxu0 0.0
        %683 = vmatpush2.msra.mxu0 0.0
        %684 = vmatprep.subr.mxu0 0.0
        %685 = vmatpush2.msra.mxu0 0.0
        %686 = vmatprep.subr.mxu0 0.0
        %687 = vmatpush2.msra.mxu0 0.0
        %688 = vmatprep.subr.mxu0 0.0
        %689 = vmatpush2.msra.mxu0 0.0
        %690 = vmatprep.subr.mxu0 0.0
        %691 = vmatpush2.msra.mxu0 0.0
        %692 = vmatprep.subr.mxu0 0.0
        %693 = vmatpush2.msra.mxu0 0.0
        %694 = vmatprep.subr.mxu0 0.0
        %695 = vmatpush2.msra.mxu0 0.0
        %696 = vmatprep.subr.mxu0 0.0
        %697 = vmatpush2.msra.mxu0 0.0
        %698 = vmatprep.subr.mxu0 0.0
        %699 = vmatpush2.msra.mxu0 0.0
        %700 = vmatprep.subr.mxu0 0.0
        %701 = vmatpush2.msra.mxu0 0.0
        %702 = vmatprep.subr.mxu0 0.0
        %703 = vmatpush2.msra.mxu0 0.0
        %704 = vmatprep.subr.mxu0 0.0
        %705 = vmatpush2.msra.mxu0 0.0
        %706 = vmatprep.mubr.f32.mxu0 0.0
        %707 = vmatmul.mubr.f32.gmra.mxu0 %v631
        %v708 = vpop.f32.mrf.mxu0
        %v709 = vadd.f32 0.0, %v708
        %v710 = vpop.f32.mrf.mxu0
        %711 = vmatprep.mubr.f32.mxu0 0.0
        %712 = vmatmul.mubr.f32.gmra.mxu0 %v634
        %v713 = vpop.f32.mrf.mxu0
        %v714 = vadd.f32 0.0, %v713
        %v715 = vpop.f32.mrf.mxu0
        %716 = vmatprep.mubr.f32.mxu0 0.0
        %717 = vmatmul.mubr.f32.gmra.mxu0 %v637
        %v718 = vpop.f32.mrf.mxu0
        %v719 = vadd.f32 0.0, %v718
        %v720 = vpop.f32.mrf.mxu0
        %721 = vmatprep.mubr.f32.mxu0 0.0
        %722 = vmatmul.mubr.f32.gmra.mxu0 %v640
        %v723 = vpop.f32.mrf.mxu0
        %v724 = vadd.f32 0.0, %v723
        %v725 = vpop.f32.mrf.mxu0
        %726 = vdwg.mxu0
        %v727 = vadd.f32 %v607, %v709
        %v728 = vadd.f32 %v612, %v714
        %v729 = vadd.f32 %v617, %v719
        %v730 = vadd.f32 %v622, %v724
        %v731 = vld [vmem:[%s2] sm:$0xff]
        %v732 = vld [vmem:[%s2 + $0x8] sm:$0xff]
        %v733 = vld [vmem:[%s2 + $0x10] sm:$0xff]
        %v734 = vld [vmem:[%s2 + $0x18] sm:$0xff]
        %736 = vset.pattern.permute.xlu0 0
        %737 = vperm.xlu0 %736, %v731
        %v738 = vpop.permute.xlu0 %737
        %741 = vset.pattern.permute.xlu0 0
        %742 = vperm.xlu0 %741, %v732
        %v743 = vpop.permute.xlu0 %742
        %746 = vset.pattern.permute.xlu0 0
        %747 = vperm.xlu0 %746, %v733
        %v748 = vpop.permute.xlu0 %747
        %751 = vset.pattern.permute.xlu0 0
        %752 = vperm.xlu0 %751, %v734
        %v753 = vpop.permute.xlu0 %752
        %v755 = vadd.f32 %v727, %v738
        %v756 = vadd.f32 %v728, %v743
        %v757 = vadd.f32 %v729, %v748
        %v758 = vadd.f32 %v730, %v753
        %v759 = vmul.f32 %v755, 0.5
        %v760 = vmul.f32 %v756, 0.5
        %v761 = vmul.f32 %v757, 0.5
        %v762 = vmul.f32 %v758, 0.5
        %v763 = vtanh.pop %v759
        %v764 = vtanh.pop %v760
        %v765 = vtanh.pop %v761
        %v766 = vtanh.pop %v762
        %v767 = vmul.f32 %v763, 0.5
        %v768 = vmul.f32 %v764, 0.5
        %v769 = vmul.f32 %v765, 0.5
        %v770 = vmul.f32 %v766, 0.5
        %v771 = vadd.f32 %v767, 0.5
        %v772 = vadd.f32 %v768, 0.5
        %v773 = vadd.f32 %v769, 0.5
        %v774 = vadd.f32 %v770, 0.5
        %v775 = vmul.f32 %v755, %v771
        %v776 = vmul.f32 %v756, %v772
        %v777 = vmul.f32 %v757, %v773
        %v778 = vmul.f32 %v758, %v774
        %779 = vrot.lane.b32.xlu0 %v775, 1
        %v780 = vpop.permute.xlu0 %779
        %781 = vrot.lane.b32.xlu0 %v776, 1
        %v782 = vpop.permute.xlu0 %781
        %783 = vrot.lane.b32.xlu0 %v777, 1
        %v784 = vpop.permute.xlu0 %783
        %785 = vrot.lane.b32.xlu0 %v778, 1
        %v786 = vpop.permute.xlu0 %785
        %v787 = vmul.f32 %v780, %v405
        %v788 = vmul.f32 %v782, %v405
        %v789 = vmul.f32 %v784, %v405
        %v790 = vmul.f32 %v786, %v405
        %791 = vrot.lane.b32.xlu0 %v775, 127
        %v792 = vpop.permute.xlu0 %791
        %793 = vrot.lane.b32.xlu0 %v776, 127
        %v794 = vpop.permute.xlu0 %793
        %795 = vrot.lane.b32.xlu0 %v777, 127
        %v796 = vpop.permute.xlu0 %795
        %797 = vrot.lane.b32.xlu0 %v778, 127
        %v798 = vpop.permute.xlu0 %797
        %v799 = vmul.f32 %v792, %v408
        %v800 = vmul.f32 %v794, %v408
        %v801 = vmul.f32 %v796, %v408
        %v802 = vmul.f32 %v798, %v408
        %v803 = vld [vmem:[%s3] sm:$0xff]
        %v804 = vld [vmem:[%s3 + $0x8] sm:$0xff]
        %v805 = vld [vmem:[%s3 + $0x10] sm:$0xff]
        %v806 = vld [vmem:[%s3 + $0x18] sm:$0xff]
        %s807 = scalar_lea.vmem %s3, 32
        %v808 = vld [vmem:[%s807] sm:$0xff]
        %v809 = vld [vmem:[%s807 + $0x8] sm:$0xff]
        %v810 = vld [vmem:[%s807 + $0x10] sm:$0xff]
        %v811 = vld [vmem:[%s807 + $0x18] sm:$0xff]
        %vm812 = vcmask 261120
        %v814 = vsel %vm812, %v808, 0
        %v817 = vsel %vm812, %v809, 0
        %v820 = vsel %vm812, %v810, 0
        %v823 = vsel %vm812, %v811, 0
        %825 = vmatprep.subr.mxu0 0.0
        %826 = vmatpush1.msra.mxu0 0.0
        %827 = vmatprep.subr.mxu0 0.0
        %828 = vmatpush1.msra.mxu0 0.0
        %829 = vmatprep.subr.mxu0 0.0
        %830 = vmatpush1.msra.mxu0 0.0
        %831 = vmatprep.subr.mxu0 0.0
        %832 = vmatpush1.msra.mxu0 0.0
        %833 = vmatprep.subr.mxu0 0.0
        %834 = vmatpush1.msra.mxu0 0.0
        %835 = vmatprep.subr.mxu0 0.0
        %836 = vmatpush1.msra.mxu0 0.0
        %837 = vmatprep.subr.mxu0 0.0
        %838 = vmatpush1.msra.mxu0 0.0
        %839 = vmatprep.subr.mxu0 0.0
        %840 = vmatpush1.msra.mxu0 0.0
        %841 = vmatprep.subr.mxu0 0.0
        %842 = vmatpush1.msra.mxu0 0.0
        %843 = vmatprep.subr.mxu0 0.0
        %844 = vmatpush1.msra.mxu0 0.0
        %845 = vmatprep.subr.mxu0 0.0
        %846 = vmatpush1.msra.mxu0 0.0
        %847 = vmatprep.subr.mxu0 0.0
        %848 = vmatpush1.msra.mxu0 0.0
        %849 = vmatprep.subr.mxu0 0.0
        %850 = vmatpush1.msra.mxu0 %v778
        %851 = vmatprep.subr.mxu0 0.0
        %852 = vmatpush1.msra.mxu0 %v777
        %853 = vmatprep.subr.mxu0 0.0
        %854 = vmatpush1.msra.mxu0 %v776
        %855 = vmatprep.subr.mxu0 0.0
        %856 = vmatpush1.msra.mxu0 %v775
        %857 = vmatprep.subr.mxu0 0.0
        %858 = vmatpush2.msra.mxu0 0.0
        %859 = vmatprep.subr.mxu0 0.0
        %860 = vmatpush2.msra.mxu0 0.0
        %861 = vmatprep.subr.mxu0 0.0
        %862 = vmatpush2.msra.mxu0 0.0
        %863 = vmatprep.subr.mxu0 0.0
        %864 = vmatpush2.msra.mxu0 0.0
        %865 = vmatprep.subr.mxu0 0.0
        %866 = vmatpush2.msra.mxu0 0.0
        %867 = vmatprep.subr.mxu0 0.0
        %868 = vmatpush2.msra.mxu0 0.0
        %869 = vmatprep.subr.mxu0 0.0
        %870 = vmatpush2.msra.mxu0 0.0
        %871 = vmatprep.subr.mxu0 0.0
        %872 = vmatpush2.msra.mxu0 0.0
        %873 = vmatprep.subr.mxu0 0.0
        %874 = vmatpush2.msra.mxu0 0.0
        %875 = vmatprep.subr.mxu0 0.0
        %876 = vmatpush2.msra.mxu0 0.0
        %877 = vmatprep.subr.mxu0 0.0
        %878 = vmatpush2.msra.mxu0 0.0
        %879 = vmatprep.subr.mxu0 0.0
        %880 = vmatpush2.msra.mxu0 0.0
        %881 = vmatprep.subr.mxu0 0.0
        %882 = vmatpush2.msra.mxu0 0.0
        %883 = vmatprep.subr.mxu0 0.0
        %884 = vmatpush2.msra.mxu0 0.0
        %885 = vmatprep.subr.mxu0 0.0
        %886 = vmatpush2.msra.mxu0 0.0
        %887 = vmatprep.subr.mxu0 0.0
        %888 = vmatpush2.msra.mxu0 0.0
        %889 = vmatprep.mubr.f32.mxu0 0.0
        %890 = vmatmul.mubr.f32.gmra.mxu0 %v814
        %v891 = vpop.f32.mrf.mxu0
        %v892 = vadd.f32 0.0, %v891
        %v893 = vpop.f32.mrf.mxu0
        %894 = vmatprep.mubr.f32.mxu0 0.0
        %895 = vmatmul.mubr.f32.gmra.mxu0 %v817
        %v896 = vpop.f32.mrf.mxu0
        %v897 = vadd.f32 0.0, %v896
        %v898 = vpop.f32.mrf.mxu0
        %899 = vmatprep.mubr.f32.mxu0 0.0
        %900 = vmatmul.mubr.f32.gmra.mxu0 %v820
        %v901 = vpop.f32.mrf.mxu0
        %v902 = vadd.f32 0.0, %v901
        %v903 = vpop.f32.mrf.mxu0
        %904 = vmatprep.mubr.f32.mxu0 0.0
        %905 = vmatmul.mubr.f32.gmra.mxu0 %v823
        %v906 = vpop.f32.mrf.mxu0
        %v907 = vadd.f32 0.0, %v906
        %v908 = vpop.f32.mrf.mxu0
        %909 = vdwg.mxu0
        %v911 = vsel %vm812, %v803, 0
        %v914 = vsel %vm812, %v804, 0
        %v917 = vsel %vm812, %v805, 0
        %v920 = vsel %vm812, %v806, 0
        %922 = vmatprep.subr.mxu0 0.0
        %923 = vmatpush1.msra.mxu0 0.0
        %924 = vmatprep.subr.mxu0 0.0
        %925 = vmatpush1.msra.mxu0 0.0
        %926 = vmatprep.subr.mxu0 0.0
        %927 = vmatpush1.msra.mxu0 0.0
        %928 = vmatprep.subr.mxu0 0.0
        %929 = vmatpush1.msra.mxu0 0.0
        %930 = vmatprep.subr.mxu0 0.0
        %931 = vmatpush1.msra.mxu0 0.0
        %932 = vmatprep.subr.mxu0 0.0
        %933 = vmatpush1.msra.mxu0 0.0
        %934 = vmatprep.subr.mxu0 0.0
        %935 = vmatpush1.msra.mxu0 0.0
        %936 = vmatprep.subr.mxu0 0.0
        %937 = vmatpush1.msra.mxu0 0.0
        %938 = vmatprep.subr.mxu0 0.0
        %939 = vmatpush1.msra.mxu0 0.0
        %940 = vmatprep.subr.mxu0 0.0
        %941 = vmatpush1.msra.mxu0 0.0
        %942 = vmatprep.subr.mxu0 0.0
        %943 = vmatpush1.msra.mxu0 0.0
        %944 = vmatprep.subr.mxu0 0.0
        %945 = vmatpush1.msra.mxu0 0.0
        %946 = vmatprep.subr.mxu0 0.0
        %947 = vmatpush1.msra.mxu0 %v790
        %948 = vmatprep.subr.mxu0 0.0
        %949 = vmatpush1.msra.mxu0 %v789
        %950 = vmatprep.subr.mxu0 0.0
        %951 = vmatpush1.msra.mxu0 %v788
        %952 = vmatprep.subr.mxu0 0.0
        %953 = vmatpush1.msra.mxu0 %v787
        %954 = vmatprep.subr.mxu0 0.0
        %955 = vmatpush2.msra.mxu0 0.0
        %956 = vmatprep.subr.mxu0 0.0
        %957 = vmatpush2.msra.mxu0 0.0
        %958 = vmatprep.subr.mxu0 0.0
        %959 = vmatpush2.msra.mxu0 0.0
        %960 = vmatprep.subr.mxu0 0.0
        %961 = vmatpush2.msra.mxu0 0.0
        %962 = vmatprep.subr.mxu0 0.0
        %963 = vmatpush2.msra.mxu0 0.0
        %964 = vmatprep.subr.mxu0 0.0
        %965 = vmatpush2.msra.mxu0 0.0
        %966 = vmatprep.subr.mxu0 0.0
        %967 = vmatpush2.msra.mxu0 0.0
        %968 = vmatprep.subr.mxu0 0.0
        %969 = vmatpush2.msra.mxu0 0.0
        %970 = vmatprep.subr.mxu0 0.0
        %971 = vmatpush2.msra.mxu0 0.0
        %972 = vmatprep.subr.mxu0 0.0
        %973 = vmatpush2.msra.mxu0 0.0
        %974 = vmatprep.subr.mxu0 0.0
        %975 = vmatpush2.msra.mxu0 0.0
        %976 = vmatprep.subr.mxu0 0.0
        %977 = vmatpush2.msra.mxu0 0.0
        %978 = vmatprep.subr.mxu0 0.0
        %979 = vmatpush2.msra.mxu0 0.0
        %980 = vmatprep.subr.mxu0 0.0
        %981 = vmatpush2.msra.mxu0 0.0
        %982 = vmatprep.subr.mxu0 0.0
        %983 = vmatpush2.msra.mxu0 0.0
        %984 = vmatprep.subr.mxu0 0.0
        %985 = vmatpush2.msra.mxu0 0.0
        %986 = vmatprep.mubr.f32.mxu0 0.0
        %987 = vmatmul.mubr.f32.gmra.mxu0 %v911
        %v988 = vpop.f32.mrf.mxu0
        %v989 = vadd.f32 %v892, %v988
        %v990 = vpop.f32.mrf.mxu0
        %991 = vmatprep.mubr.f32.mxu0 0.0
        %992 = vmatmul.mubr.f32.gmra.mxu0 %v914
        %v993 = vpop.f32.mrf.mxu0
        %v994 = vadd.f32 %v897, %v993
        %v995 = vpop.f32.mrf.mxu0
        %996 = vmatprep.mubr.f32.mxu0 0.0
        %997 = vmatmul.mubr.f32.gmra.mxu0 %v917
        %v998 = vpop.f32.mrf.mxu0
        %v999 = vadd.f32 %v902, %v998
        %v1000 = vpop.f32.mrf.mxu0
        %1001 = vmatprep.mubr.f32.mxu0 0.0
        %1002 = vmatmul.mubr.f32.gmra.mxu0 %v920
        %v1003 = vpop.f32.mrf.mxu0
        %v1004 = vadd.f32 %v907, %v1003
        %v1005 = vpop.f32.mrf.mxu0
        %1006 = vdwg.mxu0
        %s1007 = scalar_lea.vmem %s3, 64
        %v1008 = vld [vmem:[%s1007] sm:$0xff]
        %v1009 = vld [vmem:[%s1007 + $0x8] sm:$0xff]
        %v1010 = vld [vmem:[%s1007 + $0x10] sm:$0xff]
        %v1011 = vld [vmem:[%s1007 + $0x18] sm:$0xff]
        %v1013 = vsel %vm812, %v1008, 0
        %v1016 = vsel %vm812, %v1009, 0
        %v1019 = vsel %vm812, %v1010, 0
        %v1022 = vsel %vm812, %v1011, 0
        %1024 = vmatprep.subr.mxu0 0.0
        %1025 = vmatpush1.msra.mxu0 0.0
        %1026 = vmatprep.subr.mxu0 0.0
        %1027 = vmatpush1.msra.mxu0 0.0
        %1028 = vmatprep.subr.mxu0 0.0
        %1029 = vmatpush1.msra.mxu0 0.0
        %1030 = vmatprep.subr.mxu0 0.0
        %1031 = vmatpush1.msra.mxu0 0.0
        %1032 = vmatprep.subr.mxu0 0.0
        %1033 = vmatpush1.msra.mxu0 0.0
        %1034 = vmatprep.subr.mxu0 0.0
        %1035 = vmatpush1.msra.mxu0 0.0
        %1036 = vmatprep.subr.mxu0 0.0
        %1037 = vmatpush1.msra.mxu0 0.0
        %1038 = vmatprep.subr.mxu0 0.0
        %1039 = vmatpush1.msra.mxu0 0.0
        %1040 = vmatprep.subr.mxu0 0.0
        %1041 = vmatpush1.msra.mxu0 0.0
        %1042 = vmatprep.subr.mxu0 0.0
        %1043 = vmatpush1.msra.mxu0 0.0
        %1044 = vmatprep.subr.mxu0 0.0
        %1045 = vmatpush1.msra.mxu0 0.0
        %1046 = vmatprep.subr.mxu0 0.0
        %1047 = vmatpush1.msra.mxu0 0.0
        %1048 = vmatprep.subr.mxu0 0.0
        %1049 = vmatpush1.msra.mxu0 %v802
        %1050 = vmatprep.subr.mxu0 0.0
        %1051 = vmatpush1.msra.mxu0 %v801
        %1052 = vmatprep.subr.mxu0 0.0
        %1053 = vmatpush1.msra.mxu0 %v800
        %1054 = vmatprep.subr.mxu0 0.0
        %1055 = vmatpush1.msra.mxu0 %v799
        %1056 = vmatprep.subr.mxu0 0.0
        %1057 = vmatpush2.msra.mxu0 0.0
        %1058 = vmatprep.subr.mxu0 0.0
        %1059 = vmatpush2.msra.mxu0 0.0
        %1060 = vmatprep.subr.mxu0 0.0
        %1061 = vmatpush2.msra.mxu0 0.0
        %1062 = vmatprep.subr.mxu0 0.0
        %1063 = vmatpush2.msra.mxu0 0.0
        %1064 = vmatprep.subr.mxu0 0.0
        %1065 = vmatpush2.msra.mxu0 0.0
        %1066 = vmatprep.subr.mxu0 0.0
        %1067 = vmatpush2.msra.mxu0 0.0
        %1068 = vmatprep.subr.mxu0 0.0
        %1069 = vmatpush2.msra.mxu0 0.0
        %1070 = vmatprep.subr.mxu0 0.0
        %1071 = vmatpush2.msra.mxu0 0.0
        %1072 = vmatprep.subr.mxu0 0.0
        %1073 = vmatpush2.msra.mxu0 0.0
        %1074 = vmatprep.subr.mxu0 0.0
        %1075 = vmatpush2.msra.mxu0 0.0
        %1076 = vmatprep.subr.mxu0 0.0
        %1077 = vmatpush2.msra.mxu0 0.0
        %1078 = vmatprep.subr.mxu0 0.0
        %1079 = vmatpush2.msra.mxu0 0.0
        %1080 = vmatprep.subr.mxu0 0.0
        %1081 = vmatpush2.msra.mxu0 0.0
        %1082 = vmatprep.subr.mxu0 0.0
        %1083 = vmatpush2.msra.mxu0 0.0
        %1084 = vmatprep.subr.mxu0 0.0
        %1085 = vmatpush2.msra.mxu0 0.0
        %1086 = vmatprep.subr.mxu0 0.0
        %1087 = vmatpush2.msra.mxu0 0.0
        %1088 = vmatprep.mubr.f32.mxu0 0.0
        %1089 = vmatmul.mubr.f32.gmra.mxu0 %v1013
        %v1090 = vpop.f32.mrf.mxu0
        %v1091 = vadd.f32 0.0, %v1090
        %v1092 = vpop.f32.mrf.mxu0
        %1093 = vmatprep.mubr.f32.mxu0 0.0
        %1094 = vmatmul.mubr.f32.gmra.mxu0 %v1016
        %v1095 = vpop.f32.mrf.mxu0
        %v1096 = vadd.f32 0.0, %v1095
        %v1097 = vpop.f32.mrf.mxu0
        %1098 = vmatprep.mubr.f32.mxu0 0.0
        %1099 = vmatmul.mubr.f32.gmra.mxu0 %v1019
        %v1100 = vpop.f32.mrf.mxu0
        %v1101 = vadd.f32 0.0, %v1100
        %v1102 = vpop.f32.mrf.mxu0
        %1103 = vmatprep.mubr.f32.mxu0 0.0
        %1104 = vmatmul.mubr.f32.gmra.mxu0 %v1022
        %v1105 = vpop.f32.mrf.mxu0
        %v1106 = vadd.f32 0.0, %v1105
        %v1107 = vpop.f32.mrf.mxu0
        %1108 = vdwg.mxu0
        %v1109 = vadd.f32 %v989, %v1091
        %v1110 = vadd.f32 %v994, %v1096
        %v1111 = vadd.f32 %v999, %v1101
        %v1112 = vadd.f32 %v1004, %v1106
        %v1113 = vld [vmem:[%s4] sm:$0xff]
        %v1114 = vld [vmem:[%s4 + $0x8] sm:$0xff]
        %v1115 = vld [vmem:[%s4 + $0x10] sm:$0xff]
        %v1116 = vld [vmem:[%s4 + $0x18] sm:$0xff]
        %1118 = vset.pattern.permute.xlu0 0
        %1119 = vperm.xlu0 %1118, %v1113
        %v1120 = vpop.permute.xlu0 %1119
        %1123 = vset.pattern.permute.xlu0 0
        %1124 = vperm.xlu0 %1123, %v1114
        %v1125 = vpop.permute.xlu0 %1124
        %1128 = vset.pattern.permute.xlu0 0
        %1129 = vperm.xlu0 %1128, %v1115
        %v1130 = vpop.permute.xlu0 %1129
        %1133 = vset.pattern.permute.xlu0 0
        %1134 = vperm.xlu0 %1133, %v1116
        %v1135 = vpop.permute.xlu0 %1134
        %v1137 = vadd.f32 %v1109, %v1120
        %v1138 = vadd.f32 %v1110, %v1125
        %v1139 = vadd.f32 %v1111, %v1130
        %v1140 = vadd.f32 %v1112, %v1135
        %v1141 = vmul.f32 %v1137, 0.5
        %v1142 = vmul.f32 %v1138, 0.5
        %v1143 = vmul.f32 %v1139, 0.5
        %v1144 = vmul.f32 %v1140, 0.5
        %v1145 = vtanh.pop %v1141
        %v1146 = vtanh.pop %v1142
        %v1147 = vtanh.pop %v1143
        %v1148 = vtanh.pop %v1144
        %v1149 = vmul.f32 %v1145, 0.5
        %v1150 = vmul.f32 %v1146, 0.5
        %v1151 = vmul.f32 %v1147, 0.5
        %v1152 = vmul.f32 %v1148, 0.5
        %v1153 = vadd.f32 %v1149, 0.5
        %v1154 = vadd.f32 %v1150, 0.5
        %v1155 = vadd.f32 %v1151, 0.5
        %v1156 = vadd.f32 %v1152, 0.5
        %v1157 = vmul.f32 %v1137, %v1153
        %v1158 = vmul.f32 %v1138, %v1154
        %v1159 = vmul.f32 %v1139, %v1155
        %v1160 = vmul.f32 %v1140, %v1156
        %1161 = vrot.lane.b32.xlu0 %v1157, 1
        %v1162 = vpop.permute.xlu0 %1161
        %1163 = vrot.lane.b32.xlu0 %v1158, 1
        %v1164 = vpop.permute.xlu0 %1163
        %1165 = vrot.lane.b32.xlu0 %v1159, 1
        %v1166 = vpop.permute.xlu0 %1165
        %1167 = vrot.lane.b32.xlu0 %v1160, 1
        %v1168 = vpop.permute.xlu0 %1167
        %v1169 = vmul.f32 %v1162, %v405
        %v1170 = vmul.f32 %v1164, %v405
        %v1171 = vmul.f32 %v1166, %v405
        %v1172 = vmul.f32 %v1168, %v405
        %1173 = vrot.lane.b32.xlu0 %v1157, 127
        %v1174 = vpop.permute.xlu0 %1173
        %1175 = vrot.lane.b32.xlu0 %v1158, 127
        %v1176 = vpop.permute.xlu0 %1175
        %1177 = vrot.lane.b32.xlu0 %v1159, 127
        %v1178 = vpop.permute.xlu0 %1177
        %1179 = vrot.lane.b32.xlu0 %v1160, 127
        %v1180 = vpop.permute.xlu0 %1179
        %v1181 = vmul.f32 %v1174, %v408
        %v1182 = vmul.f32 %v1176, %v408
        %v1183 = vmul.f32 %v1178, %v408
        %v1184 = vmul.f32 %v1180, %v408
        %v1185 = vld [vmem:[%s5] sm:$0xff]
        %v1186 = vld [vmem:[%s5 + $0x8] sm:$0xff]
        %s1187 = scalar_lea.vmem %s5, 16
        %v1188 = vld [vmem:[%s1187] sm:$0xff]
        %v1189 = vld [vmem:[%s1187 + $0x8] sm:$0xff]
        %v1191 = vsel %vm812, %v1188, 0
        %v1194 = vsel %vm812, %v1189, 0
        %1196 = vmatprep.subr.mxu0 0.0
        %1197 = vmatpush1.msra.mxu0 0.0
        %1198 = vmatprep.subr.mxu0 0.0
        %1199 = vmatpush1.msra.mxu0 0.0
        %1200 = vmatprep.subr.mxu0 0.0
        %1201 = vmatpush1.msra.mxu0 0.0
        %1202 = vmatprep.subr.mxu0 0.0
        %1203 = vmatpush1.msra.mxu0 0.0
        %1204 = vmatprep.subr.mxu0 0.0
        %1205 = vmatpush1.msra.mxu0 0.0
        %1206 = vmatprep.subr.mxu0 0.0
        %1207 = vmatpush1.msra.mxu0 0.0
        %1208 = vmatprep.subr.mxu0 0.0
        %1209 = vmatpush1.msra.mxu0 0.0
        %1210 = vmatprep.subr.mxu0 0.0
        %1211 = vmatpush1.msra.mxu0 0.0
        %1212 = vmatprep.subr.mxu0 0.0
        %1213 = vmatpush1.msra.mxu0 0.0
        %1214 = vmatprep.subr.mxu0 0.0
        %1215 = vmatpush1.msra.mxu0 0.0
        %1216 = vmatprep.subr.mxu0 0.0
        %1217 = vmatpush1.msra.mxu0 0.0
        %1218 = vmatprep.subr.mxu0 0.0
        %1219 = vmatpush1.msra.mxu0 0.0
        %1220 = vmatprep.subr.mxu0 0.0
        %1221 = vmatpush1.msra.mxu0 %v1160
        %1222 = vmatprep.subr.mxu0 0.0
        %1223 = vmatpush1.msra.mxu0 %v1159
        %1224 = vmatprep.subr.mxu0 0.0
        %1225 = vmatpush1.msra.mxu0 %v1158
        %1226 = vmatprep.subr.mxu0 0.0
        %1227 = vmatpush1.msra.mxu0 %v1157
        %1228 = vmatprep.subr.mxu0 0.0
        %1229 = vmatpush2.msra.mxu0 0.0
        %1230 = vmatprep.subr.mxu0 0.0
        %1231 = vmatpush2.msra.mxu0 0.0
        %1232 = vmatprep.subr.mxu0 0.0
        %1233 = vmatpush2.msra.mxu0 0.0
        %1234 = vmatprep.subr.mxu0 0.0
        %1235 = vmatpush2.msra.mxu0 0.0
        %1236 = vmatprep.subr.mxu0 0.0
        %1237 = vmatpush2.msra.mxu0 0.0
        %1238 = vmatprep.subr.mxu0 0.0
        %1239 = vmatpush2.msra.mxu0 0.0
        %1240 = vmatprep.subr.mxu0 0.0
        %1241 = vmatpush2.msra.mxu0 0.0
        %1242 = vmatprep.subr.mxu0 0.0
        %1243 = vmatpush2.msra.mxu0 0.0
        %1244 = vmatprep.subr.mxu0 0.0
        %1245 = vmatpush2.msra.mxu0 0.0
        %1246 = vmatprep.subr.mxu0 0.0
        %1247 = vmatpush2.msra.mxu0 0.0
        %1248 = vmatprep.subr.mxu0 0.0
        %1249 = vmatpush2.msra.mxu0 0.0
        %1250 = vmatprep.subr.mxu0 0.0
        %1251 = vmatpush2.msra.mxu0 0.0
        %1252 = vmatprep.subr.mxu0 0.0
        %1253 = vmatpush2.msra.mxu0 0.0
        %1254 = vmatprep.subr.mxu0 0.0
        %1255 = vmatpush2.msra.mxu0 0.0
        %1256 = vmatprep.subr.mxu0 0.0
        %1257 = vmatpush2.msra.mxu0 0.0
        %1258 = vmatprep.subr.mxu0 0.0
        %1259 = vmatpush2.msra.mxu0 0.0
        %1260 = vmatprep.mubr.f32.mxu0 0.0
        %1261 = vmatmul.mubr.f32.gmra.mxu0 %v1191
        %v1262 = vpop.f32.mrf.mxu0
        %v1263 = vadd.f32 0.0, %v1262
        %v1264 = vpop.f32.mrf.mxu0
        %1265 = vmatprep.mubr.f32.mxu0 0.0
        %1266 = vmatmul.mubr.f32.gmra.mxu0 %v1194
        %v1267 = vpop.f32.mrf.mxu0
        %v1268 = vadd.f32 0.0, %v1267
        %v1269 = vpop.f32.mrf.mxu0
        %1270 = vdwg.mxu0
        %v1272 = vsel %vm812, %v1185, 0
        %v1275 = vsel %vm812, %v1186, 0
        %1277 = vmatprep.subr.mxu0 0.0
        %1278 = vmatpush1.msra.mxu0 0.0
        %1279 = vmatprep.subr.mxu0 0.0
        %1280 = vmatpush1.msra.mxu0 0.0
        %1281 = vmatprep.subr.mxu0 0.0
        %1282 = vmatpush1.msra.mxu0 0.0
        %1283 = vmatprep.subr.mxu0 0.0
        %1284 = vmatpush1.msra.mxu0 0.0
        %1285 = vmatprep.subr.mxu0 0.0
        %1286 = vmatpush1.msra.mxu0 0.0
        %1287 = vmatprep.subr.mxu0 0.0
        %1288 = vmatpush1.msra.mxu0 0.0
        %1289 = vmatprep.subr.mxu0 0.0
        %1290 = vmatpush1.msra.mxu0 0.0
        %1291 = vmatprep.subr.mxu0 0.0
        %1292 = vmatpush1.msra.mxu0 0.0
        %1293 = vmatprep.subr.mxu0 0.0
        %1294 = vmatpush1.msra.mxu0 0.0
        %1295 = vmatprep.subr.mxu0 0.0
        %1296 = vmatpush1.msra.mxu0 0.0
        %1297 = vmatprep.subr.mxu0 0.0
        %1298 = vmatpush1.msra.mxu0 0.0
        %1299 = vmatprep.subr.mxu0 0.0
        %1300 = vmatpush1.msra.mxu0 0.0
        %1301 = vmatprep.subr.mxu0 0.0
        %1302 = vmatpush1.msra.mxu0 %v1172
        %1303 = vmatprep.subr.mxu0 0.0
        %1304 = vmatpush1.msra.mxu0 %v1171
        %1305 = vmatprep.subr.mxu0 0.0
        %1306 = vmatpush1.msra.mxu0 %v1170
        %1307 = vmatprep.subr.mxu0 0.0
        %1308 = vmatpush1.msra.mxu0 %v1169
        %1309 = vmatprep.subr.mxu0 0.0
        %1310 = vmatpush2.msra.mxu0 0.0
        %1311 = vmatprep.subr.mxu0 0.0
        %1312 = vmatpush2.msra.mxu0 0.0
        %1313 = vmatprep.subr.mxu0 0.0
        %1314 = vmatpush2.msra.mxu0 0.0
        %1315 = vmatprep.subr.mxu0 0.0
        %1316 = vmatpush2.msra.mxu0 0.0
        %1317 = vmatprep.subr.mxu0 0.0
        %1318 = vmatpush2.msra.mxu0 0.0
        %1319 = vmatprep.subr.mxu0 0.0
        %1320 = vmatpush2.msra.mxu0 0.0
        %1321 = vmatprep.subr.mxu0 0.0
        %1322 = vmatpush2.msra.mxu0 0.0
        %1323 = vmatprep.subr.mxu0 0.0
        %1324 = vmatpush2.msra.mxu0 0.0
        %1325 = vmatprep.subr.mxu0 0.0
        %1326 = vmatpush2.msra.mxu0 0.0
        %1327 = vmatprep.subr.mxu0 0.0
        %1328 = vmatpush2.msra.mxu0 0.0
        %1329 = vmatprep.subr.mxu0 0.0
        %1330 = vmatpush2.msra.mxu0 0.0
        %1331 = vmatprep.subr.mxu0 0.0
        %1332 = vmatpush2.msra.mxu0 0.0
        %1333 = vmatprep.subr.mxu0 0.0
        %1334 = vmatpush2.msra.mxu0 0.0
        %1335 = vmatprep.subr.mxu0 0.0
        %1336 = vmatpush2.msra.mxu0 0.0
        %1337 = vmatprep.subr.mxu0 0.0
        %1338 = vmatpush2.msra.mxu0 0.0
        %1339 = vmatprep.subr.mxu0 0.0
        %1340 = vmatpush2.msra.mxu0 0.0
        %1341 = vmatprep.mubr.f32.mxu0 0.0
        %1342 = vmatmul.mubr.f32.gmra.mxu0 %v1272
        %v1343 = vpop.f32.mrf.mxu0
        %v1344 = vadd.f32 %v1263, %v1343
        %v1345 = vpop.f32.mrf.mxu0
        %1346 = vmatprep.mubr.f32.mxu0 0.0
        %1347 = vmatmul.mubr.f32.gmra.mxu0 %v1275
        %v1348 = vpop.f32.mrf.mxu0
        %v1349 = vadd.f32 %v1268, %v1348
        %v1350 = vpop.f32.mrf.mxu0
        %1351 = vdwg.mxu0
        %s1352 = scalar_lea.vmem %s5, 32
        %v1353 = vld [vmem:[%s1352] sm:$0xff]
        %v1354 = vld [vmem:[%s1352 + $0x8] sm:$0xff]
        %v1356 = vsel %vm812, %v1353, 0
        %v1359 = vsel %vm812, %v1354, 0
        %1361 = vmatprep.subr.mxu0 0.0
        %1362 = vmatpush1.msra.mxu0 0.0
        %1363 = vmatprep.subr.mxu0 0.0
        %1364 = vmatpush1.msra.mxu0 0.0
        %1365 = vmatprep.subr.mxu0 0.0
        %1366 = vmatpush1.msra.mxu0 0.0
        %1367 = vmatprep.subr.mxu0 0.0
        %1368 = vmatpush1.msra.mxu0 0.0
        %1369 = vmatprep.subr.mxu0 0.0
        %1370 = vmatpush1.msra.mxu0 0.0
        %1371 = vmatprep.subr.mxu0 0.0
        %1372 = vmatpush1.msra.mxu0 0.0
        %1373 = vmatprep.subr.mxu0 0.0
        %1374 = vmatpush1.msra.mxu0 0.0
        %1375 = vmatprep.subr.mxu0 0.0
        %1376 = vmatpush1.msra.mxu0 0.0
        %1377 = vmatprep.subr.mxu0 0.0
        %1378 = vmatpush1.msra.mxu0 0.0
        %1379 = vmatprep.subr.mxu0 0.0
        %1380 = vmatpush1.msra.mxu0 0.0
        %1381 = vmatprep.subr.mxu0 0.0
        %1382 = vmatpush1.msra.mxu0 0.0
        %1383 = vmatprep.subr.mxu0 0.0
        %1384 = vmatpush1.msra.mxu0 0.0
        %1385 = vmatprep.subr.mxu0 0.0
        %1386 = vmatpush1.msra.mxu0 %v1184
        %1387 = vmatprep.subr.mxu0 0.0
        %1388 = vmatpush1.msra.mxu0 %v1183
        %1389 = vmatprep.subr.mxu0 0.0
        %1390 = vmatpush1.msra.mxu0 %v1182
        %1391 = vmatprep.subr.mxu0 0.0
        %1392 = vmatpush1.msra.mxu0 %v1181
        %1393 = vmatprep.subr.mxu0 0.0
        %1394 = vmatpush2.msra.mxu0 0.0
        %1395 = vmatprep.subr.mxu0 0.0
        %1396 = vmatpush2.msra.mxu0 0.0
        %1397 = vmatprep.subr.mxu0 0.0
        %1398 = vmatpush2.msra.mxu0 0.0
        %1399 = vmatprep.subr.mxu0 0.0
        %1400 = vmatpush2.msra.mxu0 0.0
        %1401 = vmatprep.subr.mxu0 0.0
        %1402 = vmatpush2.msra.mxu0 0.0
        %1403 = vmatprep.subr.mxu0 0.0
        %1404 = vmatpush2.msra.mxu0 0.0
        %1405 = vmatprep.subr.mxu0 0.0
        %1406 = vmatpush2.msra.mxu0 0.0
        %1407 = vmatprep.subr.mxu0 0.0
        %1408 = vmatpush2.msra.mxu0 0.0
        %1409 = vmatprep.subr.mxu0 0.0
        %1410 = vmatpush2.msra.mxu0 0.0
        %1411 = vmatprep.subr.mxu0 0.0
        %1412 = vmatpush2.msra.mxu0 0.0
        %1413 = vmatprep.subr.mxu0 0.0
        %1414 = vmatpush2.msra.mxu0 0.0
        %1415 = vmatprep.subr.mxu0 0.0
        %1416 = vmatpush2.msra.mxu0 0.0
        %1417 = vmatprep.subr.mxu0 0.0
        %1418 = vmatpush2.msra.mxu0 0.0
        %1419 = vmatprep.subr.mxu0 0.0
        %1420 = vmatpush2.msra.mxu0 0.0
        %1421 = vmatprep.subr.mxu0 0.0
        %1422 = vmatpush2.msra.mxu0 0.0
        %1423 = vmatprep.subr.mxu0 0.0
        %1424 = vmatpush2.msra.mxu0 0.0
        %1425 = vmatprep.mubr.f32.mxu0 0.0
        %1426 = vmatmul.mubr.f32.gmra.mxu0 %v1356
        %v1427 = vpop.f32.mrf.mxu0
        %v1428 = vadd.f32 0.0, %v1427
        %v1429 = vpop.f32.mrf.mxu0
        %1430 = vmatprep.mubr.f32.mxu0 0.0
        %1431 = vmatmul.mubr.f32.gmra.mxu0 %v1359
        %v1432 = vpop.f32.mrf.mxu0
        %v1433 = vadd.f32 0.0, %v1432
        %v1434 = vpop.f32.mrf.mxu0
        %1435 = vdwg.mxu0
        %v1436 = vadd.f32 %v1344, %v1428
        %v1437 = vadd.f32 %v1349, %v1433
        %v1438 = vld [vmem:[%s6] sm:$0xff]
        %v1439 = vld [vmem:[%s6 + $0x8] sm:$0xff]
        %1441 = vset.pattern.permute.xlu0 0
        %1442 = vperm.xlu0 %1441, %v1438
        %v1443 = vpop.permute.xlu0 %1442
        %1446 = vset.pattern.permute.xlu0 0
        %1447 = vperm.xlu0 %1446, %v1439
        %v1448 = vpop.permute.xlu0 %1447
        %v1450 = vadd.f32 %v1436, %v1443
        %v1451 = vadd.f32 %v1437, %v1448
        %v1452 = vmul.f32 %v1450, 0.5
        %v1453 = vmul.f32 %v1451, 0.5
        %v1454 = vtanh.pop %v1452
        %v1455 = vtanh.pop %v1453
        %v1456 = vmul.f32 %v1454, 0.5
        %v1457 = vmul.f32 %v1455, 0.5
        %v1458 = vadd.f32 %v1456, 0.5
        %v1459 = vadd.f32 %v1457, 0.5
        %v1460 = vmul.f32 %v1450, %v1458
        %v1461 = vmul.f32 %v1451, %v1459
        %1462 = vrot.lane.b32.xlu0 %v1460, 1
        %v1463 = vpop.permute.xlu0 %1462
        %1464 = vrot.lane.b32.xlu0 %v1461, 1
        %v1465 = vpop.permute.xlu0 %1464
        %v1466 = vmul.f32 %v1463, %v405
        %v1467 = vmul.f32 %v1465, %v405
        %1468 = vrot.lane.b32.xlu0 %v1460, 127
        %v1469 = vpop.permute.xlu0 %1468
        %1470 = vrot.lane.b32.xlu0 %v1461, 127
        %v1471 = vpop.permute.xlu0 %1470
        %v1472 = vmul.f32 %v1469, %v408
        %v1473 = vmul.f32 %v1471, %v408
        %v1474 = vld [vmem:[%s7] sm:$0x7]
        %s1475 = scalar_lea.vmem %s7, 4
        %v1476 = vld [vmem:[%s1475] sm:$0x7]
        %v1478 = vsel %vm430, %v1476, 0
        %1480 = vmatprep.subr.mxu0 0.0
        %1481 = vmatpush1.msra.mxu0 0.0
        %1482 = vmatprep.subr.mxu0 0.0
        %1483 = vmatpush1.msra.mxu0 0.0
        %1484 = vmatprep.subr.mxu0 0.0
        %1485 = vmatpush1.msra.mxu0 0.0
        %1486 = vmatprep.subr.mxu0 0.0
        %1487 = vmatpush1.msra.mxu0 0.0
        %1488 = vmatprep.subr.mxu0 0.0
        %1489 = vmatpush1.msra.mxu0 0.0
        %1490 = vmatprep.subr.mxu0 0.0
        %1491 = vmatpush1.msra.mxu0 0.0
        %1492 = vmatprep.subr.mxu0 0.0
        %1493 = vmatpush1.msra.mxu0 0.0
        %1494 = vmatprep.subr.mxu0 0.0
        %1495 = vmatpush1.msra.mxu0 0.0
        %1496 = vmatprep.subr.mxu0 0.0
        %1497 = vmatpush1.msra.mxu0 0.0
        %1498 = vmatprep.subr.mxu0 0.0
        %1499 = vmatpush1.msra.mxu0 0.0
        %1500 = vmatprep.subr.mxu0 0.0
        %1501 = vmatpush1.msra.mxu0 0.0
        %1502 = vmatprep.subr.mxu0 0.0
        %1503 = vmatpush1.msra.mxu0 0.0
        %1504 = vmatprep.subr.mxu0 0.0
        %1505 = vmatpush1.msra.mxu0 0.0
        %1506 = vmatprep.subr.mxu0 0.0
        %1507 = vmatpush1.msra.mxu0 0.0
        %1508 = vmatprep.subr.mxu0 0.0
        %1509 = vmatpush1.msra.mxu0 %v1461
        %1510 = vmatprep.subr.mxu0 0.0
        %1511 = vmatpush1.msra.mxu0 %v1460
        %1512 = vmatprep.subr.mxu0 0.0
        %1513 = vmatpush2.msra.mxu0 0.0
        %1514 = vmatprep.subr.mxu0 0.0
        %1515 = vmatpush2.msra.mxu0 0.0
        %1516 = vmatprep.subr.mxu0 0.0
        %1517 = vmatpush2.msra.mxu0 0.0
        %1518 = vmatprep.subr.mxu0 0.0
        %1519 = vmatpush2.msra.mxu0 0.0
        %1520 = vmatprep.subr.mxu0 0.0
        %1521 = vmatpush2.msra.mxu0 0.0
        %1522 = vmatprep.subr.mxu0 0.0
        %1523 = vmatpush2.msra.mxu0 0.0
        %1524 = vmatprep.subr.mxu0 0.0
        %1525 = vmatpush2.msra.mxu0 0.0
        %1526 = vmatprep.subr.mxu0 0.0
        %1527 = vmatpush2.msra.mxu0 0.0
        %1528 = vmatprep.subr.mxu0 0.0
        %1529 = vmatpush2.msra.mxu0 0.0
        %1530 = vmatprep.subr.mxu0 0.0
        %1531 = vmatpush2.msra.mxu0 0.0
        %1532 = vmatprep.subr.mxu0 0.0
        %1533 = vmatpush2.msra.mxu0 0.0
        %1534 = vmatprep.subr.mxu0 0.0
        %1535 = vmatpush2.msra.mxu0 0.0
        %1536 = vmatprep.subr.mxu0 0.0
        %1537 = vmatpush2.msra.mxu0 0.0
        %1538 = vmatprep.subr.mxu0 0.0
        %1539 = vmatpush2.msra.mxu0 0.0
        %1540 = vmatprep.subr.mxu0 0.0
        %1541 = vmatpush2.msra.mxu0 0.0
        %1542 = vmatprep.subr.mxu0 0.0
        %1543 = vmatpush2.msra.mxu0 0.0
        %1544 = vmatprep.mubr.f32.mxu0 0.0
        %1545 = vmatmul.mubr.f32.gmra.mxu0 %v1478
        %v1546 = vpop.f32.mrf.mxu0
        %v1547 = vadd.f32 0.0, %v1546
        %v1548 = vpop.f32.mrf.mxu0
        %1549 = vdwg.mxu0
        %v1551 = vsel %vm430, %v1474, 0
        %1553 = vmatprep.subr.mxu0 0.0
        %1554 = vmatpush1.msra.mxu0 0.0
        %1555 = vmatprep.subr.mxu0 0.0
        %1556 = vmatpush1.msra.mxu0 0.0
        %1557 = vmatprep.subr.mxu0 0.0
        %1558 = vmatpush1.msra.mxu0 0.0
        %1559 = vmatprep.subr.mxu0 0.0
        %1560 = vmatpush1.msra.mxu0 0.0
        %1561 = vmatprep.subr.mxu0 0.0
        %1562 = vmatpush1.msra.mxu0 0.0
        %1563 = vmatprep.subr.mxu0 0.0
        %1564 = vmatpush1.msra.mxu0 0.0
        %1565 = vmatprep.subr.mxu0 0.0
        %1566 = vmatpush1.msra.mxu0 0.0
        %1567 = vmatprep.subr.mxu0 0.0
        %1568 = vmatpush1.msra.mxu0 0.0
        %1569 = vmatprep.subr.mxu0 0.0
        %1570 = vmatpush1.msra.mxu0 0.0
        %1571 = vmatprep.subr.mxu0 0.0
        %1572 = vmatpush1.msra.mxu0 0.0
        %1573 = vmatprep.subr.mxu0 0.0
        %1574 = vmatpush1.msra.mxu0 0.0
        %1575 = vmatprep.subr.mxu0 0.0
        %1576 = vmatpush1.msra.mxu0 0.0
        %1577 = vmatprep.subr.mxu0 0.0
        %1578 = vmatpush1.msra.mxu0 0.0
        %1579 = vmatprep.subr.mxu0 0.0
        %1580 = vmatpush1.msra.mxu0 0.0
        %1581 = vmatprep.subr.mxu0 0.0
        %1582 = vmatpush1.msra.mxu0 %v1467
        %1583 = vmatprep.subr.mxu0 0.0
        %1584 = vmatpush1.msra.mxu0 %v1466
        %1585 = vmatprep.subr.mxu0 0.0
        %1586 = vmatpush2.msra.mxu0 0.0
        %1587 = vmatprep.subr.mxu0 0.0
        %1588 = vmatpush2.msra.mxu0 0.0
        %1589 = vmatprep.subr.mxu0 0.0
        %1590 = vmatpush2.msra.mxu0 0.0
        %1591 = vmatprep.subr.mxu0 0.0
        %1592 = vmatpush2.msra.mxu0 0.0
        %1593 = vmatprep.subr.mxu0 0.0
        %1594 = vmatpush2.msra.mxu0 0.0
        %1595 = vmatprep.subr.mxu0 0.0
        %1596 = vmatpush2.msra.mxu0 0.0
        %1597 = vmatprep.subr.mxu0 0.0
        %1598 = vmatpush2.msra.mxu0 0.0
        %1599 = vmatprep.subr.mxu0 0.0
        %1600 = vmatpush2.msra.mxu0 0.0
        %1601 = vmatprep.subr.mxu0 0.0
        %1602 = vmatpush2.msra.mxu0 0.0
        %1603 = vmatprep.subr.mxu0 0.0
        %1604 = vmatpush2.msra.mxu0 0.0
        %1605 = vmatprep.subr.mxu0 0.0
        %1606 = vmatpush2.msra.mxu0 0.0
        %1607 = vmatprep.subr.mxu0 0.0
        %1608 = vmatpush2.msra.mxu0 0.0
        %1609 = vmatprep.subr.mxu0 0.0
        %1610 = vmatpush2.msra.mxu0 0.0
        %1611 = vmatprep.subr.mxu0 0.0
        %1612 = vmatpush2.msra.mxu0 0.0
        %1613 = vmatprep.subr.mxu0 0.0
        %1614 = vmatpush2.msra.mxu0 0.0
        %1615 = vmatprep.subr.mxu0 0.0
        %1616 = vmatpush2.msra.mxu0 0.0
        %1617 = vmatprep.mubr.f32.mxu0 0.0
        %1618 = vmatmul.mubr.f32.gmra.mxu0 %v1551
        %v1619 = vpop.f32.mrf.mxu0
        %v1620 = vadd.f32 %v1547, %v1619
        %v1621 = vpop.f32.mrf.mxu0
        %1622 = vdwg.mxu0
        %s1623 = scalar_lea.vmem %s7, 8
        %v1624 = vld [vmem:[%s1623] sm:$0x7]
        %v1626 = vsel %vm430, %v1624, 0
        %1628 = vmatprep.subr.mxu0 0.0
        %1629 = vmatpush1.msra.mxu0 0.0
        %1630 = vmatprep.subr.mxu0 0.0
        %1631 = vmatpush1.msra.mxu0 0.0
        %1632 = vmatprep.subr.mxu0 0.0
        %1633 = vmatpush1.msra.mxu0 0.0
        %1634 = vmatprep.subr.mxu0 0.0
        %1635 = vmatpush1.msra.mxu0 0.0
        %1636 = vmatprep.subr.mxu0 0.0
        %1637 = vmatpush1.msra.mxu0 0.0
        %1638 = vmatprep.subr.mxu0 0.0
        %1639 = vmatpush1.msra.mxu0 0.0
        %1640 = vmatprep.subr.mxu0 0.0
        %1641 = vmatpush1.msra.mxu0 0.0
        %1642 = vmatprep.subr.mxu0 0.0
        %1643 = vmatpush1.msra.mxu0 0.0
        %1644 = vmatprep.subr.mxu0 0.0
        %1645 = vmatpush1.msra.mxu0 0.0
        %1646 = vmatprep.subr.mxu0 0.0
        %1647 = vmatpush1.msra.mxu0 0.0
        %1648 = vmatprep.subr.mxu0 0.0
        %1649 = vmatpush1.msra.mxu0 0.0
        %1650 = vmatprep.subr.mxu0 0.0
        %1651 = vmatpush1.msra.mxu0 0.0
        %1652 = vmatprep.subr.mxu0 0.0
        %1653 = vmatpush1.msra.mxu0 0.0
        %1654 = vmatprep.subr.mxu0 0.0
        %1655 = vmatpush1.msra.mxu0 0.0
        %1656 = vmatprep.subr.mxu0 0.0
        %1657 = vmatpush1.msra.mxu0 %v1473
        %1658 = vmatprep.subr.mxu0 0.0
        %1659 = vmatpush1.msra.mxu0 %v1472
        %1660 = vmatprep.subr.mxu0 0.0
        %1661 = vmatpush2.msra.mxu0 0.0
        %1662 = vmatprep.subr.mxu0 0.0
        %1663 = vmatpush2.msra.mxu0 0.0
        %1664 = vmatprep.subr.mxu0 0.0
        %1665 = vmatpush2.msra.mxu0 0.0
        %1666 = vmatprep.subr.mxu0 0.0
        %1667 = vmatpush2.msra.mxu0 0.0
        %1668 = vmatprep.subr.mxu0 0.0
        %1669 = vmatpush2.msra.mxu0 0.0
        %1670 = vmatprep.subr.mxu0 0.0
        %1671 = vmatpush2.msra.mxu0 0.0
        %1672 = vmatprep.subr.mxu0 0.0
        %1673 = vmatpush2.msra.mxu0 0.0
        %1674 = vmatprep.subr.mxu0 0.0
        %1675 = vmatpush2.msra.mxu0 0.0
        %1676 = vmatprep.subr.mxu0 0.0
        %1677 = vmatpush2.msra.mxu0 0.0
        %1678 = vmatprep.subr.mxu0 0.0
        %1679 = vmatpush2.msra.mxu0 0.0
        %1680 = vmatprep.subr.mxu0 0.0
        %1681 = vmatpush2.msra.mxu0 0.0
        %1682 = vmatprep.subr.mxu0 0.0
        %1683 = vmatpush2.msra.mxu0 0.0
        %1684 = vmatprep.subr.mxu0 0.0
        %1685 = vmatpush2.msra.mxu0 0.0
        %1686 = vmatprep.subr.mxu0 0.0
        %1687 = vmatpush2.msra.mxu0 0.0
        %1688 = vmatprep.subr.mxu0 0.0
        %1689 = vmatpush2.msra.mxu0 0.0
        %1690 = vmatprep.subr.mxu0 0.0
        %1691 = vmatpush2.msra.mxu0 0.0
        %1692 = vmatprep.mubr.f32.mxu0 0.0
        %1693 = vmatmul.mubr.f32.gmra.mxu0 %v1626
        %v1694 = vpop.f32.mrf.mxu0
        %v1695 = vadd.f32 0.0, %v1694
        %v1696 = vpop.f32.mrf.mxu0
        %1697 = vdwg.mxu0
        %v1698 = vadd.f32 %v1620, %v1695
        %v1699 = vld [vmem:[%s8] sm:$0x7]
        %1701 = vset.pattern.permute.xlu0 0
        %1702 = vperm.xlu0 %1701, %v1699
        %v1703 = vpop.permute.xlu0 %1702
        %v1705 = vadd.f32 %v1698, %v1703
        %v1706 = vmul.f32 %v1705, 0.5
        %v1707 = vtanh.pop %v1706
        %v1708 = vmul.f32 %v1707, 0.5
        %v1709 = vadd.f32 %v1708, 0.5
        %v1710 = vmul.f32 %v1705, %v1709
        %1711 = vrot.lane.b32.xlu0 %v1710, 1
        %v1712 = vpop.permute.xlu0 %1711
        %v1713 = vmul.f32 %v1712, %v405
        %1714 = vrot.lane.b32.xlu0 %v1710, 127
        %v1715 = vpop.permute.xlu0 %1714
        %v1716 = vmul.f32 %v1715, %v408
        %s1717 = sld [smem:[#allocation2]]
        %v1718 = vstv %s1717
        %v1719 = vadd.f32 %v1718, 0.0
        %s1720 = sld [smem:[#allocation3]]
        %v1721 = vstv %s1720
        %v1722 = vmul.f32 %v1721, %v1713
        %v1723 = vadd.f32 %v1719, %v1722
        %s1724 = sld [smem:[#allocation3 + $0x1]]
        %v1725 = vstv %s1724
        %v1726 = vmul.f32 %v1725, %v1710
        %v1727 = vadd.f32 %v1723, %v1726
        %s1728 = sld [smem:[#allocation3 + $0x2]]
        %v1729 = vstv %s1728
        %v1730 = vmul.f32 %v1729, %v1716
        %v1731 = vadd.f32 %v1727, %v1730
        %s1732 = sld [smem:[#allocation3 + $0x3]]
        %v1733 = vstv %s1732
        %v1734 = vmul.f32 %v1733, %v1713
        %v1736 = vrot.slane %v1734, 1
        %v1738 = vadd.f32 %v1731, %v1736
        %s1739 = sld [smem:[#allocation3 + $0x4]]
        %v1740 = vstv %s1739
        %v1741 = vmul.f32 %v1740, %v1710
        %v1743 = vrot.slane %v1741, 1
        %v1745 = vadd.f32 %v1738, %v1743
        %s1746 = sld [smem:[#allocation3 + $0x5]]
        %v1747 = vstv %s1746
        %v1748 = vmul.f32 %v1747, %v1716
        %v1750 = vrot.slane %v1748, 1
        %v1752 = vadd.f32 %v1745, %v1750
        %s1753 = sld [smem:[#allocation3 + $0x6]]
        %v1754 = vstv %s1753
        %v1755 = vmul.f32 %v1754, %v1713
        %v1757 = vrot.slane %v1755, 2
        %v1759 = vadd.f32 %v1752, %v1757
        %s1760 = sld [smem:[#allocation3 + $0x7]]
        %v1761 = vstv %s1760
        %v1762 = vmul.f32 %v1761, %v1710
        %v1764 = vrot.slane %v1762, 2
        %v1766 = vadd.f32 %v1759, %v1764
        %s1767 = sld [smem:[#allocation3 + $0x8]]
        %v1768 = vstv %s1767
        %v1769 = vmul.f32 %v1768, %v1716
        %v1771 = vrot.slane %v1769, 2
        %v1773 = vadd.f32 %v1766, %v1771
        %1774 = vst [vmem:[%s393] sm:$0x1] %v1773
        %s1775 = sand.u32 %s271, 1
        %s1776 = scalar_lea.sflag [#allocation4], %s1775
        %s1777 = sand.u32 %s271, 1
        %s1778 = scalar_lea.vmem [#allocation6], %s1777
        // Predicated region
        $region69: #{tpu_custom_call.1} parent=63 // pred_check
          %p1779 = pneg %p281
        $region70: #{tpu_custom_call.1} parent=63 // pred_check_branch
          %1781 = sbr.rel (%p1779) target = $region72
        $region71: #{tpu_custom_call.1} parent=63 // pred_region
          %s1783 = ssub.s32 16, 16
          %1784 = vsyncadd %s1776, %s1783
          %s1785 = smul.addr %s27, 16
          %s1786 = scalar_lea.hbm %s11, %s1785
          %s1788 = sshll.u32 %s1778, 4
          %s1789 = int_to_ptr.vmem [resolvable:$true] %s1788
          %1791 = dma.vmem_to_hbm [thread:$0]  %s1789, 16, %s1786, %s1776
        $region72: #{tpu_custom_call.1} parent=63 // pred_fallthru
          _
      $region64: #{tpu_custom_call.1} parent=5 // pred_fallthru
        _
      %p1792 = scmp.le.s32.totalorder 2, %s22
      // Predicated region
      $region73: #{tpu_custom_call.1} parent=5 // pred_check
        %p1793 = pneg %p1792
      $region74: #{tpu_custom_call.1} parent=5 // pred_check_branch
        %1795 = sbr.rel (%p1793) target = $region76
      $region75: #{tpu_custom_call.1} parent=5 // pred_region
        %s1796 = ssub.s32 %s22, 2
        // Predicated region
        $region77: #{tpu_custom_call.1} parent=75 // pred_check
          %p1797 = pneg %p287
        $region78: #{tpu_custom_call.1} parent=75 // pred_check_branch
          %1799 = sbr.rel (%p1797) target = $region80
        $region79: #{tpu_custom_call.1} parent=75 // pred_region
          %s1800 = sand.u32 %s272, 1
          %s1801 = scalar_lea.sflag [#allocation4], %s1800
          %s1802 = sand.u32 %s272, 1
          %s1803 = scalar_lea.vmem [#allocation6], %s1802
          %1804 = dma.done %s1801, 16
        $region80: #{tpu_custom_call.1} parent=75 // pred_fallthru
          _
      $region76: #{tpu_custom_call.1} parent=5 // pred_fallthru
        _
    $region6: #{tpu_custom_call.1} parent=1 // loop_footer
      %s26 = sadd.s32 1, %s22
    $region7: #{tpu_custom_call.1} parent=1 // loop_footer_branch
      %21 = sbr.rel target = $region3
    $region8: #{tpu_custom_call.1} parent=1 // loop_exit
      _
    %1805 = vsyncpa [#allocation4], 1
    %s1806 = scalar_lea.sflag [#allocation4], 1
    %1807 = vsyncpa %s1806, 1
    %1808 = vsyncpa [#allocation5], 1
    %s1809 = scalar_lea.sflag [#allocation5], 1
    %1810 = vsyncpa %s1809, 1

</llo_original>
